<compile_context>
chip_gen: v6e
topology: v6e:2x2x1
jax: 0.10.0
libtpu: 0.0.40
codegen_flags: <defaults>
</compile_context>

<pallas_src>
import functools

import jax
import jax.numpy as jnp
from jax.experimental import pallas as pl
from jax.experimental.pallas import tpu as pltpu

D_GLOB = 4096   # input descriptor dim
H1 = 256        # fully_connected_glob_1 out
H2 = 256        # fully_connected_glob_2 out
EPS = 1e-6
TK = 1024       # contraction tile (nk = 4); use 2048 on v6e/v7x if desired


def _hfnet_glob_kernel(d0_ref, d1_ref, w1_ref, b1_ref, w2a_ref, w2b_ref, b2_ref,
                       out_ref, cos_ref,
                       acc0_ref, acc1_ref, dot_ref, n0_ref, n1_ref):
    k = pl.program_id(0)
    nk = pl.num_programs(0)

    @pl.when(k == 0)
    def _init():
        acc0_ref[...] = jnp.zeros_like(acc0_ref)
        acc1_ref[...] = jnp.zeros_like(acc1_ref)
        dot_ref[...] = jnp.zeros_like(dot_ref)
        n0_ref[...] = jnp.zeros_like(n0_ref)
        n1_ref[...] = jnp.zeros_like(n1_ref)

    d0 = d0_ref[...]                 # (B, TK) f32
    d1 = d1_ref[...]                 # (B, TK) f32

    # --- partial cosine reductions (f32 VPU/XLU; hides under the w1 DMA) ---
    dot_ref[...] += jnp.sum(d0 * d1, axis=-1, keepdims=True)
    n0_ref[...] += jnp.sum(d0 * d0, axis=-1, keepdims=True)
    n1_ref[...] += jnp.sum(d1 * d1, axis=-1, keepdims=True)

    # --- first layer: bf16 operands, f32 accumulation.  Both descriptors reuse
    # the same resident w1 k-tile, so the weight is streamed from HBM once. ---
    w1 = w1_ref[...]
    acc0_ref[...] += jnp.dot(d0.astype(jnp.bfloat16), w1,
                             preferred_element_type=jnp.float32)
    acc1_ref[...] += jnp.dot(d1.astype(jnp.bfloat16), w1,
                             preferred_element_type=jnp.float32)

    @pl.when(k == nk - 1)
    def _finalize():
        # torch.nn.CosineSimilarity(dim=1, eps=1e-6):
        #   cos = w12 / sqrt(max(w1 * w2, eps^2))
        denom = jnp.sqrt(jnp.maximum(n0_ref[...] * n1_ref[...], EPS * EPS))
        cos = dot_ref[...] / denom
        cos_ref[...] = (1.0 - cos) * 0.5                       # (B, 1)

        # fully_connected_glob_1 bias + fused fully_connected_glob_2 on concat:
        #   cat([h0, h1]) @ W2 == h0 @ W2[:H1] + h1 @ W2[H1:]
        h0 = (acc0_ref[...] + b1_ref[...]).astype(jnp.bfloat16)
        h1 = (acc1_ref[...] + b1_ref[...]).astype(jnp.bfloat16)
        out = (jnp.dot(h0, w2a_ref[...], preferred_element_type=jnp.float32)
               + jnp.dot(h1, w2b_ref[...], preferred_element_type=jnp.float32)
               + b2_ref[...])                                  # (B, H2) f32
        out_ref[...] = out


def prepare_hfnet_glob_params(w1, b1, w2, b2):
    """One-time (model-init) weight prep: bf16 cast, split W2, reshape biases.

    Do NOT do this per forward call -- the per-call astype of w1 alone reads
    4 MiB f32 + writes 2 MiB bf16, more HBM traffic than the entire kernel.
    """
    return dict(
        w1=jnp.asarray(w1, jnp.bfloat16),                     # (4096, 256)
        b1=jnp.asarray(b1, jnp.float32).reshape(1, H1),       # (1, 256)
        w2a=jnp.asarray(w2[:H1, :], jnp.bfloat16),            # acts on h0
        w2b=jnp.asarray(w2[H1:, :], jnp.bfloat16),            # acts on h1
        b2=jnp.asarray(b2, jnp.float32).reshape(1, H2),       # (1, 256)
    )


@functools.partial(jax.jit, static_argnames=("tk",))
def hfnet_glob_forward(desc0, desc1, params, *, tk=TK):
    """desc0/desc1: (B, 4096) f32.  params: from prepare_hfnet_glob_params.
    Returns (x_, cos_dist) matching ImageNavHFNetQ.forward_glob."""
    B = desc0.shape[0]
    assert desc0.shape == (B, D_GLOB) and desc1.shape == (B, D_GLOB)
    assert D_GLOB % tk == 0
    nk = D_GLOB // tk

    flops = 2 * (2 * B) * D_GLOB * H1 + 2 * 2 * B * H1 * H2 + 6 * B * D_GLOB
    bytes_accessed = (2 * B * D_GLOB * 4          # descriptors (f32)
                      + D_GLOB * H1 * 2           # w1 (bf16) -- dominant stream
                      + 2 * H1 * H2 * 2           # w2a/w2b (bf16, resident)
                      + (H1 + H2) * 4             # biases
                      + B * H2 * 4 + B * 4)       # outputs

    grid_spec = pltpu.PrefetchScalarGridSpec(
        num_scalar_prefetch=0,
        grid=(nk,),
        in_specs=[
            pl.BlockSpec((B, tk), lambda k: (0, k)),      # desc0 k-slab (f32)
            pl.BlockSpec((B, tk), lambda k: (0, k)),      # desc1 k-slab (f32)
            pl.BlockSpec((tk, H1), lambda k: (k, 0)),     # w1 k-tile (bf16, streamed)
            pl.BlockSpec((1, H1), lambda k: (0, 0)),      # b1 (resident)
            pl.BlockSpec((H1, H2), lambda k: (0, 0)),     # w2a (resident)
            pl.BlockSpec((H1, H2), lambda k: (0, 0)),     # w2b (resident)
            pl.BlockSpec((1, H2), lambda k: (0, 0)),      # b2 (resident)
        ],
        out_specs=(
            pl.BlockSpec((B, H2), lambda k: (0, 0)),      # x_ (lane-dense, written once)
            pl.BlockSpec((B, 1), lambda k: (0, 0)),       # cos_dist (tiny)
        ),
        scratch_shapes=[
            pltpu.VMEM((B, H1), jnp.float32),             # acc for h0
            pltpu.VMEM((B, H1), jnp.float32),             # acc for h1
            pltpu.VMEM((B, 1), jnp.float32),              # sum(d0*d1)
            pltpu.VMEM((B, 1), jnp.float32),              # sum(d0*d0)
            pltpu.VMEM((B, 1), jnp.float32),              # sum(d1*d1)
        ],
    )

    out, cos = pl.pallas_call(
        _hfnet_glob_kernel,
        out_shape=(
            jax.ShapeDtypeStruct((B, H2), jnp.float32),
            jax.ShapeDtypeStruct((B, 1), jnp.float32),
        ),
        grid_spec=grid_spec,
        compiler_params=pltpu.CompilerParams(
            dimension_semantics=("arbitrary",),
            vmem_limit_bytes=32 * 1024 * 1024,
        ),
        cost_estimate=pl.CostEstimate(
            flops=flops, transcendentals=B, bytes_accessed=bytes_accessed),
    )(desc0.astype(jnp.float32), desc1.astype(jnp.float32),
      params["w1"], params["b1"], params["w2a"], params["w2b"], params["b2"])
    return out, cos.reshape(B)


def _reference(desc0, desc1, w1, b1, w2, b2):
    dot = jnp.sum(desc0 * desc1, axis=1)
    n0 = jnp.sum(desc0 * desc0, axis=1)
    n1 = jnp.sum(desc1 * desc1, axis=1)
    cos = dot / jnp.sqrt(jnp.maximum(n0 * n1, EPS * EPS))
    cos_dist = (1.0 - cos) / 2.0
    h0 = desc0 @ w1 + b1
    h1 = desc1 @ w1 + b1
    x = jnp.concatenate([h0, h1], axis=1)
    x_ = x @ w2 + b2
    return x_, cos_dist


if __name__ == "__main__":
    key = jax.random.PRNGKey(0)
    k0, k1, k2, k3, k4, k5 = jax.random.split(key, 6)

    B = 8
    desc0 = jax.random.normal(k0, (B, D_GLOB), dtype=jnp.float32)
    desc1 = jax.random.normal(k1, (B, D_GLOB), dtype=jnp.float32)

    # Synthetic parameters for Linear(4096,256) / Linear(512,256), stored (in, out).
    w1 = jax.random.normal(k2, (D_GLOB, H1), dtype=jnp.float32) * 0.01
    b1 = jax.random.normal(k3, (H1,), dtype=jnp.float32) * 0.01
    w2 = jax.random.normal(k4, (2 * H1, H2), dtype=jnp.float32) * 0.01
    b2 = jax.random.normal(k5, (H2,), dtype=jnp.float32) * 0.01

    # One-time weight prep (model init), not per forward call.
    params = prepare_hfnet_glob_params(w1, b1, w2, b2)

    x_, cos_dist = hfnet_glob_forward(desc0, desc1, params)
    jax.block_until_ready((x_, cos_dist))

    x_ref, cos_ref = _reference(desc0, desc1, w1, b1, w2, b2)
    assert x_.shape == (B, H2) and cos_dist.shape == (B,)
    # x_ uses bf16 weights/operands (f32 accumulate) -> looser tolerance vs f32 ref.
    assert jnp.allclose(x_, x_ref, atol=1e-2, rtol=1e-2)
    # cosine path is pure f32 -> tight tolerance.
    assert jnp.allclose(cos_dist, cos_ref, atol=1e-5, rtol=1e-5)

    print("KERNEL_OK")
</pallas_src>

<mosaic_0001>
module attributes {stable_mosaic.version = 11 : i64} {
  func.func @_hfnet_glob_kernel(%arg0: i32, %arg1: memref<8x1024xf32, #tpu.memory_space<vmem>>, %arg2: memref<8x1024xf32, #tpu.memory_space<vmem>>, %arg3: memref<1024x256xbf16, #tpu.memory_space<vmem>>, %arg4: memref<1x256xf32, #tpu.memory_space<vmem>>, %arg5: memref<256x256xbf16, #tpu.memory_space<vmem>>, %arg6: memref<256x256xbf16, #tpu.memory_space<vmem>>, %arg7: memref<1x256xf32, #tpu.memory_space<vmem>>, %arg8: memref<8x256xf32, #tpu.memory_space<vmem>>, %arg9: memref<8x1xf32, #tpu.memory_space<vmem>>, %arg10: memref<8x256xf32, #tpu.memory_space<vmem>>, %arg11: memref<8x256xf32, #tpu.memory_space<vmem>>, %arg12: memref<8x1xf32, #tpu.memory_space<vmem>>, %arg13: memref<8x1xf32, #tpu.memory_space<vmem>>, %arg14: memref<8x1xf32, #tpu.memory_space<vmem>>) attributes {dimension_semantics = [#tpu.dimension_semantics<arbitrary>], iteration_bounds = array<i64: 4>, scalar_prefetch = 0 : i64, scratch_operands = 5 : i64, tpu.core_type = #tpu.core_type<tc>, window_params = [{transform_indices = @transform_0, window_bounds = array<i64: 8, 1024>}, {transform_indices = @transform_1, window_bounds = array<i64: 8, 1024>}, {transform_indices = @transform_2, window_bounds = array<i64: 1024, 256>}, {pipeline_mode = #tpu.pipeline_mode<synchronous>, transform_indices = @transform_3, window_bounds = array<i64: 1, 256>}, {pipeline_mode = #tpu.pipeline_mode<synchronous>, transform_indices = @transform_4, window_bounds = array<i64: 256, 256>}, {pipeline_mode = #tpu.pipeline_mode<synchronous>, transform_indices = @transform_5, window_bounds = array<i64: 256, 256>}, {pipeline_mode = #tpu.pipeline_mode<synchronous>, transform_indices = @transform_6, window_bounds = array<i64: 1, 256>}, {pipeline_mode = #tpu.pipeline_mode<synchronous>, transform_indices = @transform_7, window_bounds = array<i64: 8, 256>}, {pipeline_mode = #tpu.pipeline_mode<synchronous>, transform_indices = @transform_8, window_bounds = array<i64: 8, 1>}]} {
    %c0_i32 = arith.constant 0 : i32
    %0 = arith.cmpi eq, %arg0, %c0_i32 : i32
    %1 = arith.extui %0 : i1 to i32
    %c0_i32_0 = arith.constant 0 : i32
    %2 = arith.cmpi ne, %1, %c0_i32_0 : i32
    scf.if %2 {
      %cst_31 = arith.constant 0.000000e+00 : f32
      %37 = vector.broadcast %cst_31 : f32 to vector<8x256xf32>
      %c0_32 = arith.constant 0 : index
      %c0_33 = arith.constant 0 : index
      %38 = vector.load %arg10[%c0_32, %c0_33] : memref<8x256xf32, #tpu.memory_space<vmem>>, vector<8x256xf32>
      tpu.vector_store %arg10[%c0_32, %c0_33], %37 {strides = array<i32>} : memref<8x256xf32, #tpu.memory_space<vmem>>, vector<8x256xf32>,
      %cst_34 = arith.constant 0.000000e+00 : f32
      %39 = vector.broadcast %cst_34 : f32 to vector<8x256xf32>
      %c0_35 = arith.constant 0 : index
      %c0_36 = arith.constant 0 : index
      %40 = vector.load %arg11[%c0_35, %c0_36] : memref<8x256xf32, #tpu.memory_space<vmem>>, vector<8x256xf32>
      tpu.vector_store %arg11[%c0_35, %c0_36], %39 {strides = array<i32>} : memref<8x256xf32, #tpu.memory_space<vmem>>, vector<8x256xf32>,
      %cst_37 = arith.constant 0.000000e+00 : f32
      %41 = vector.broadcast %cst_37 : f32 to vector<8x1xf32>
      %c0_38 = arith.constant 0 : index
      %c0_39 = arith.constant 0 : index
      %42 = vector.load %arg12[%c0_38, %c0_39] : memref<8x1xf32, #tpu.memory_space<vmem>>, vector<8x1xf32>
      tpu.vector_store %arg12[%c0_38, %c0_39], %41 {strides = array<i32>} : memref<8x1xf32, #tpu.memory_space<vmem>>, vector<8x1xf32>,
      %cst_40 = arith.constant 0.000000e+00 : f32
      %43 = vector.broadcast %cst_40 : f32 to vector<8x1xf32>
      %c0_41 = arith.constant 0 : index
      %c0_42 = arith.constant 0 : index
      %44 = vector.load %arg13[%c0_41, %c0_42] : memref<8x1xf32, #tpu.memory_space<vmem>>, vector<8x1xf32>
      tpu.vector_store %arg13[%c0_41, %c0_42], %43 {strides = array<i32>} : memref<8x1xf32, #tpu.memory_space<vmem>>, vector<8x1xf32>,
      %cst_43 = arith.constant 0.000000e+00 : f32
      %45 = vector.broadcast %cst_43 : f32 to vector<8x1xf32>
      %c0_44 = arith.constant 0 : index
      %c0_45 = arith.constant 0 : index
      %46 = vector.load %arg14[%c0_44, %c0_45] : memref<8x1xf32, #tpu.memory_space<vmem>>, vector<8x1xf32>
      tpu.vector_store %arg14[%c0_44, %c0_45], %45 {strides = array<i32>} : memref<8x1xf32, #tpu.memory_space<vmem>>, vector<8x1xf32>,
    } else {
    }
    %c0 = arith.constant 0 : index
    %c0_1 = arith.constant 0 : index
    %3 = vector.load %arg1[%c0, %c0_1] : memref<8x1024xf32, #tpu.memory_space<vmem>>, vector<8x1024xf32>
    %c0_2 = arith.constant 0 : index
    %c0_3 = arith.constant 0 : index
    %4 = vector.load %arg2[%c0_2, %c0_3] : memref<8x1024xf32, #tpu.memory_space<vmem>>, vector<8x1024xf32>
    %c0_4 = arith.constant 0 : index
    %c0_5 = arith.constant 0 : index
    %5 = vector.load %arg12[%c0_4, %c0_5] : memref<8x1xf32, #tpu.memory_space<vmem>>, vector<8x1xf32>
    %6 = arith.mulf %3, %4 : vector<8x1024xf32>
    %cst = arith.constant dense<0.000000e+00> : vector<8xf32>
    %7 = vector.multi_reduction <add>, %6, %cst [1] : vector<8x1024xf32> to vector<8xf32>
    %8 = vector.shape_cast %7 : vector<8xf32> to vector<8x1xf32>
    %9 = arith.addf %5, %8 : vector<8x1xf32>
    %c0_6 = arith.constant 0 : index
    %c0_7 = arith.constant 0 : index
    %10 = vector.load %arg12[%c0_6, %c0_7] : memref<8x1xf32, #tpu.memory_space<vmem>>, vector<8x1xf32>
    tpu.vector_store %arg12[%c0_6, %c0_7], %9 {strides = array<i32>} : memref<8x1xf32, #tpu.memory_space<vmem>>, vector<8x1xf32>,
    %c0_8 = arith.constant 0 : index
    %c0_9 = arith.constant 0 : index
    %11 = vector.load %arg13[%c0_8, %c0_9] : memref<8x1xf32, #tpu.memory_space<vmem>>, vector<8x1xf32>
    %12 = arith.mulf %3, %3 : vector<8x1024xf32>
    %cst_10 = arith.constant dense<0.000000e+00> : vector<8xf32>
    %13 = vector.multi_reduction <add>, %12, %cst_10 [1] : vector<8x1024xf32> to vector<8xf32>
    %14 = vector.shape_cast %13 : vector<8xf32> to vector<8x1xf32>
    %15 = arith.addf %11, %14 : vector<8x1xf32>
    %c0_11 = arith.constant 0 : index
    %c0_12 = arith.constant 0 : index
    %16 = vector.load %arg13[%c0_11, %c0_12] : memref<8x1xf32, #tpu.memory_space<vmem>>, vector<8x1xf32>
    tpu.vector_store %arg13[%c0_11, %c0_12], %15 {strides = array<i32>} : memref<8x1xf32, #tpu.memory_space<vmem>>, vector<8x1xf32>,
    %c0_13 = arith.constant 0 : index
    %c0_14 = arith.constant 0 : index
    %17 = vector.load %arg14[%c0_13, %c0_14] : memref<8x1xf32, #tpu.memory_space<vmem>>, vector<8x1xf32>
    %18 = arith.mulf %4, %4 : vector<8x1024xf32>
    %cst_15 = arith.constant dense<0.000000e+00> : vector<8xf32>
    %19 = vector.multi_reduction <add>, %18, %cst_15 [1] : vector<8x1024xf32> to vector<8xf32>
    %20 = vector.shape_cast %19 : vector<8xf32> to vector<8x1xf32>
    %21 = arith.addf %17, %20 : vector<8x1xf32>
    %c0_16 = arith.constant 0 : index
    %c0_17 = arith.constant 0 : index
    %22 = vector.load %arg14[%c0_16, %c0_17] : memref<8x1xf32, #tpu.memory_space<vmem>>, vector<8x1xf32>
    tpu.vector_store %arg14[%c0_16, %c0_17], %21 {strides = array<i32>} : memref<8x1xf32, #tpu.memory_space<vmem>>, vector<8x1xf32>,
    %c0_18 = arith.constant 0 : index
    %c0_19 = arith.constant 0 : index
    %23 = vector.load %arg3[%c0_18, %c0_19] : memref<1024x256xbf16, #tpu.memory_space<vmem>>, vector<1024x256xbf16>
    %c0_20 = arith.constant 0 : index
    %c0_21 = arith.constant 0 : index
    %24 = vector.load %arg10[%c0_20, %c0_21] : memref<8x256xf32, #tpu.memory_space<vmem>>, vector<8x256xf32>
    %25 = arith.truncf %3 : vector<8x1024xf32> to vector<8x1024xbf16>
    %cst_22 = arith.constant dense<0.000000e+00> : vector<8x256xf32>
    %26 = tpu.matmul %25, %23, %cst_22 {dimension_numbers = #tpu.dot_dimension_numbers<[1], [0], [0], [1], [0, 0, 1, 1], [], []>} : vector<8x1024xbf16>, vector<1024x256xbf16>, vector<8x256xf32> -> vector<8x256xf32>
    %27 = arith.addf %24, %26 : vector<8x256xf32>
    %c0_23 = arith.constant 0 : index
    %c0_24 = arith.constant 0 : index
    %28 = vector.load %arg10[%c0_23, %c0_24] : memref<8x256xf32, #tpu.memory_space<vmem>>, vector<8x256xf32>
    tpu.vector_store %arg10[%c0_23, %c0_24], %27 {strides = array<i32>} : memref<8x256xf32, #tpu.memory_space<vmem>>, vector<8x256xf32>,
    %c0_25 = arith.constant 0 : index
    %c0_26 = arith.constant 0 : index
    %29 = vector.load %arg11[%c0_25, %c0_26] : memref<8x256xf32, #tpu.memory_space<vmem>>, vector<8x256xf32>
    %30 = arith.truncf %4 : vector<8x1024xf32> to vector<8x1024xbf16>
    %cst_27 = arith.constant dense<0.000000e+00> : vector<8x256xf32>
    %31 = tpu.matmul %30, %23, %cst_27 {dimension_numbers = #tpu.dot_dimension_numbers<[1], [0], [0], [1], [0, 0, 1, 1], [], []>} : vector<8x1024xbf16>, vector<1024x256xbf16>, vector<8x256xf32> -> vector<8x256xf32>
    %32 = arith.addf %29, %31 : vector<8x256xf32>
    %c0_28 = arith.constant 0 : index
    %c0_29 = arith.constant 0 : index
    %33 = vector.load %arg11[%c0_28, %c0_29] : memref<8x256xf32, #tpu.memory_space<vmem>>, vector<8x256xf32>
    tpu.vector_store %arg11[%c0_28, %c0_29], %32 {strides = array<i32>} : memref<8x256xf32, #tpu.memory_space<vmem>>, vector<8x256xf32>,
    %c3_i32 = arith.constant 3 : i32
    %34 = arith.cmpi eq, %arg0, %c3_i32 : i32
    %35 = arith.extui %34 : i1 to i32
    %c0_i32_30 = arith.constant 0 : i32
    %36 = arith.cmpi ne, %35, %c0_i32_30 : i32
    scf.if %36 {
      %c0_31 = arith.constant 0 : index
      %c0_32 = arith.constant 0 : index
      %37 = vector.load %arg13[%c0_31, %c0_32] : memref<8x1xf32, #tpu.memory_space<vmem>>, vector<8x1xf32>
      %c0_33 = arith.constant 0 : index
      %c0_34 = arith.constant 0 : index
      %38 = vector.load %arg14[%c0_33, %c0_34] : memref<8x1xf32, #tpu.memory_space<vmem>>, vector<8x1xf32>
      %39 = arith.mulf %37, %38 : vector<8x1xf32>
      %cst_35 = arith.constant 9.99999996E-13 : f32
      %40 = vector.broadcast %cst_35 : f32 to vector<8x1xf32>
      %41 = arith.maximumf %39, %40 : vector<8x1xf32>
      %42 = math.sqrt %41 : vector<8x1xf32>
      %c0_36 = arith.constant 0 : index
      %c0_37 = arith.constant 0 : index
      %43 = vector.load %arg12[%c0_36, %c0_37] : memref<8x1xf32, #tpu.memory_space<vmem>>, vector<8x1xf32>
      %44 = arith.divf %43, %42 : vector<8x1xf32>
      %cst_38 = arith.constant 1.000000e+00 : f32
      %45 = vector.broadcast %cst_38 : f32 to vector<8x1xf32>
      %46 = arith.subf %45, %44 : vector<8x1xf32>
      %cst_39 = arith.constant 5.000000e-01 : f32
      %47 = vector.broadcast %cst_39 : f32 to vector<8x1xf32>
      %48 = arith.mulf %46, %47 : vector<8x1xf32>
      %c0_40 = arith.constant 0 : index
      %c0_41 = arith.constant 0 : index
      %49 = vector.load %arg9[%c0_40, %c0_41] : memref<8x1xf32, #tpu.memory_space<vmem>>, vector<8x1xf32>
      tpu.vector_store %arg9[%c0_40, %c0_41], %48 {strides = array<i32>} : memref<8x1xf32, #tpu.memory_space<vmem>>, vector<8x1xf32>,
      %c0_42 = arith.constant 0 : index
      %c0_43 = arith.constant 0 : index
      %50 = vector.load %arg10[%c0_42, %c0_43] : memref<8x256xf32, #tpu.memory_space<vmem>>, vector<8x256xf32>
      %c0_44 = arith.constant 0 : index
      %c0_45 = arith.constant 0 : index
      %51 = vector.load %arg4[%c0_44, %c0_45] : memref<1x256xf32, #tpu.memory_space<vmem>>, vector<1x256xf32>
      %52 = vector.broadcast %51 : vector<1x256xf32> to vector<8x256xf32>
      %53 = arith.addf %50, %52 : vector<8x256xf32>
      %54 = arith.truncf %53 : vector<8x256xf32> to vector<8x256xbf16>
      %c0_46 = arith.constant 0 : index
      %c0_47 = arith.constant 0 : index
      %55 = vector.load %arg11[%c0_46, %c0_47] : memref<8x256xf32, #tpu.memory_space<vmem>>, vector<8x256xf32>
      %c0_48 = arith.constant 0 : index
      %c0_49 = arith.constant 0 : index
      %56 = vector.load %arg4[%c0_48, %c0_49] : memref<1x256xf32, #tpu.memory_space<vmem>>, vector<1x256xf32>
      %57 = vector.broadcast %56 : vector<1x256xf32> to vector<8x256xf32>
      %58 = arith.addf %55, %57 : vector<8x256xf32>
      %59 = arith.truncf %58 : vector<8x256xf32> to vector<8x256xbf16>
      %c0_50 = arith.constant 0 : index
      %c0_51 = arith.constant 0 : index
      %60 = vector.load %arg5[%c0_50, %c0_51] : memref<256x256xbf16, #tpu.memory_space<vmem>>, vector<256x256xbf16>
      %cst_52 = arith.constant dense<0.000000e+00> : vector<8x256xf32>
      %61 = tpu.matmul %54, %60, %cst_52 {dimension_numbers = #tpu.dot_dimension_numbers<[1], [0], [0], [1], [0, 0, 1, 1], [], []>} : vector<8x256xbf16>, vector<256x256xbf16>, vector<8x256xf32> -> vector<8x256xf32>
      %c0_53 = arith.constant 0 : index
      %c0_54 = arith.constant 0 : index
      %62 = vector.load %arg6[%c0_53, %c0_54] : memref<256x256xbf16, #tpu.memory_space<vmem>>, vector<256x256xbf16>
      %cst_55 = arith.constant dense<0.000000e+00> : vector<8x256xf32>
      %63 = tpu.matmul %59, %62, %cst_55 {dimension_numbers = #tpu.dot_dimension_numbers<[1], [0], [0], [1], [0, 0, 1, 1], [], []>} : vector<8x256xbf16>, vector<256x256xbf16>, vector<8x256xf32> -> vector<8x256xf32>
      %64 = arith.addf %61, %63 : vector<8x256xf32>
      %c0_56 = arith.constant 0 : index
      %c0_57 = arith.constant 0 : index
      %65 = vector.load %arg7[%c0_56, %c0_57] : memref<1x256xf32, #tpu.memory_space<vmem>>, vector<1x256xf32>
      %66 = vector.broadcast %65 : vector<1x256xf32> to vector<8x256xf32>
      %67 = arith.addf %64, %66 : vector<8x256xf32>
      %c0_58 = arith.constant 0 : index
      %c0_59 = arith.constant 0 : index
      %68 = vector.load %arg8[%c0_58, %c0_59] : memref<8x256xf32, #tpu.memory_space<vmem>>, vector<8x256xf32>
      tpu.vector_store %arg8[%c0_58, %c0_59], %67 {strides = array<i32>} : memref<8x256xf32, #tpu.memory_space<vmem>>, vector<8x256xf32>,
    } else {
    }
    return
  }
  func.func @transform_0(%arg0: i32) -> (i32, i32) {
    %c0_i32 = arith.constant 0 : i32
    %c0_i32_0 = arith.constant 0 : i32
    return %c0_i32, %arg0 : i32, i32
  }
  func.func @transform_1(%arg0: i32) -> (i32, i32) {
    %c0_i32 = arith.constant 0 : i32
    %c0_i32_0 = arith.constant 0 : i32
    return %c0_i32, %arg0 : i32, i32
  }
  func.func @transform_2(%arg0: i32) -> (i32, i32) {
    %c0_i32 = arith.constant 0 : i32
    %c0_i32_0 = arith.constant 0 : i32
    return %arg0, %c0_i32 : i32, i32
  }
  func.func @transform_3(%arg0: i32) -> (i32, i32) {
    %c0_i32 = arith.constant 0 : i32
    %c0_i32_0 = arith.constant 0 : i32
    %c0_i32_1 = arith.constant 0 : i32
    return %c0_i32, %c0_i32_0 : i32, i32
  }
  func.func @transform_4(%arg0: i32) -> (i32, i32) {
    %c0_i32 = arith.constant 0 : i32
    %c0_i32_0 = arith.constant 0 : i32
    %c0_i32_1 = arith.constant 0 : i32
    return %c0_i32, %c0_i32_0 : i32, i32
  }
  func.func @transform_5(%arg0: i32) -> (i32, i32) {
    %c0_i32 = arith.constant 0 : i32
    %c0_i32_0 = arith.constant 0 : i32
    %c0_i32_1 = arith.constant 0 : i32
    return %c0_i32, %c0_i32_0 : i32, i32
  }
  func.func @transform_6(%arg0: i32) -> (i32, i32) {
    %c0_i32 = arith.constant 0 : i32
    %c0_i32_0 = arith.constant 0 : i32
    %c0_i32_1 = arith.constant 0 : i32
    return %c0_i32, %c0_i32_0 : i32, i32
  }
  func.func @transform_7(%arg0: i32) -> (i32, i32) {
    %c0_i32 = arith.constant 0 : i32
    %c0_i32_0 = arith.constant 0 : i32
    %c0_i32_1 = arith.constant 0 : i32
    return %c0_i32, %c0_i32_0 : i32, i32
  }
  func.func @transform_8(%arg0: i32) -> (i32, i32) {
    %c0_i32 = arith.constant 0 : i32
    %c0_i32_0 = arith.constant 0 : i32
    %c0_i32_1 = arith.constant 0 : i32
    return %c0_i32, %c0_i32_0 : i32, i32
  }
}

</mosaic_0001>

<llo_original>
// kernel: hfnet_glob_forward.1
$region0: #{hfnet_glob_forward.1}
  #allocation0 [shape = 'u32[]', space=smem, size = 0x4, offset = 0x4, fixed_abs, tag = 'smem constant byte address 0x4 - core index']
  #allocation1 [shape = 'u32[144,128]{1,0:T(1,128)}', space=vmem, size = 0x12000, scoped, tag = 'internal scratch']
  #allocation2 [shape = 'f32[8,256]{1,0:T(8,128)}', space=vmem, size = 0x2000, scoped, tag = 'scratch operand']
  #allocation3 [shape = 'f32[8,256]{1,0:T(8,128)}', space=vmem, size = 0x2000, scoped, tag = 'scratch operand']
  #allocation4 [shape = 'f32[8,1]{1,0:T(8,128)}', space=vmem, size = 0x1000, scoped, tag = 'scratch operand']
  #allocation5 [shape = 'f32[8,1]{1,0:T(8,128)}', space=vmem, size = 0x1000, scoped, tag = 'scratch operand']
  #allocation6 [shape = 'f32[8,1]{1,0:T(8,128)}', space=vmem, size = 0x1000, scoped, tag = 'scratch operand']
  %s0 = inlined_call_operand.hbm [shape: f32[8,4096], index: 0, kind: input, shape index: {}]
  %s1 = inlined_call_operand.hbm [shape: f32[8,4096], index: 1, kind: input, shape index: {}]
  %s2 = inlined_call_operand.hbm [shape: bf16[4096,256], index: 2, kind: input, shape index: {}]
  %s3 = inlined_call_operand.hbm [shape: f32[1,256], index: 3, kind: input, shape index: {}]
  %s4 = inlined_call_operand.hbm [shape: bf16[256,256], index: 4, kind: input, shape index: {}]
  %s5 = inlined_call_operand.hbm [shape: bf16[256,256], index: 5, kind: input, shape index: {}]
  %s6 = inlined_call_operand.hbm [shape: f32[1,256], index: 6, kind: input, shape index: {}]
  %s7 = inlined_call_operand.hbm [shape: f32[8,256], index: 7, kind: output, shape index: {0}]
  %s8 = inlined_call_operand.vmem [shape: f32[8,1], index: 8, kind: output, shape index: {1}]
  %9 = xla_tuple %s7, %s8
  %s10 = sld [smem:[#allocation0]]
  $region105: #{hfnet_glob_forward.1} parent=0
    _
  %s12 = ssub.s32 1, %s10
  %s13 = scalar_select 0, %s12, %s10
  $region1: #{hfnet_glob_forward.1} parent=0
    #allocation7 [shape = 'u8[65536]{0}', space=vmem, size = 0x10000, scoped, tag = 'input window, operand 0']
    #allocation8 [shape = 's32[2]{0}', space=sflag, size = 0x8, scoped, tag = 'scoped memory for hfnet_glob_forward.1']
    #allocation9 [shape = 's32[2]{0}', space=sflag, size = 0x8, scoped, tag = 'scoped memory for hfnet_glob_forward.1']
    #allocation10 [shape = 'u8[65536]{0}', space=vmem, size = 0x10000, scoped, tag = 'input window, operand 1']
    #allocation11 [shape = 's32[2]{0}', space=sflag, size = 0x8, scoped, tag = 'scoped memory for hfnet_glob_forward.1']
    #allocation12 [shape = 'u8[1048576]{0}', space=vmem, size = 0x100000, scoped, tag = 'input window, operand 2']
    #allocation13 [shape = 'u8[1024]{0}', space=vmem, size = 0x400, scoped, tag = 'input window, operand 3, single buffered']
    #allocation14 [shape = 's32[1]{0}', space=sflag, size = 0x4, scoped, tag = 'scoped memory for hfnet_glob_forward.1']
    #allocation15 [shape = 'u8[131072]{0}', space=vmem, size = 0x20000, scoped, tag = 'input window, operand 4, single buffered']
    #allocation16 [shape = 'u8[131072]{0}', space=vmem, size = 0x20000, scoped, tag = 'input window, operand 5, single buffered']
    #allocation17 [shape = 's32[1]{0}', space=sflag, size = 0x4, scoped, tag = 'scoped memory for hfnet_glob_forward.1']
    #allocation18 [shape = 'u8[1024]{0}', space=vmem, size = 0x400, scoped, tag = 'input window, operand 6, single buffered']
    #allocation19 [shape = 'u8[8192]{0}', space=vmem, size = 0x2000, scoped, tag = 'output window, operand 0, single buffered']
    %14 = vsyncpa [#allocation8], 0
    %s15 = scalar_lea.sflag [#allocation8], 1
    %16 = vsyncpa %s15, 0
    %17 = vsyncpa [#allocation11], 0
    %s18 = scalar_lea.sflag [#allocation11], 1
    %19 = vsyncpa %s18, 0
    %20 = vsyncpa [#allocation14], 0
    %21 = vsyncpa [#allocation17], 0
    %22 = vsyncpa [#allocation9], 0
    loop: start=0, step=1, limit=6
    $region2: #{hfnet_glob_forward.1} parent=1 // loop_pre_header
      _
    $region3: #{hfnet_glob_forward.1} parent=1 // loop_header
      %s24 = sphi 0, %s28
      %p25 = scmp.ge.s32.totalorder %s24, 6
      %s34 = sphi 0, %s36
      %s37 = sphi 0, %s34
      %s38 = sphi 0, %s37
      %s54 = sphi 0, %s38
      %s60 = sphi 0, %s62
      %s63 = sphi 0, %s60
      %s64 = sphi 0, %s63
      %s80 = sphi 0, %s64
      %s86 = sphi 0, %s88
      %s89 = sphi 0, %s86
      %s90 = sphi 0, %s89
      %s106 = sphi 0, %s90
      %s110 = sphi 0, %s110
      %s112 = sphi 0, %s110
      %s113 = sphi 0, %s112
      %s127 = sphi 0, %s113
      %s131 = sphi 0, %s131
      %s133 = sphi 0, %s131
      %s134 = sphi 0, %s133
      %s148 = sphi 0, %s134
      %s152 = sphi 0, %s152
      %s154 = sphi 0, %s152
      %s155 = sphi 0, %s154
      %s169 = sphi 0, %s155
      %s173 = sphi 0, %s173
      %s175 = sphi 0, %s173
      %s176 = sphi 0, %s175
      %s190 = sphi 0, %s176
      %s194 = sphi 0, %s194
      %s196 = sphi 0, %s194
      %s197 = sphi 0, %s196
      %s211 = sphi 0, %s197
      %s215 = sphi 0, %s215
      %s217 = sphi 0, %s215
      %s218 = sphi 0, %s217
      %s232 = sphi 0, %s218
    $region4: #{hfnet_glob_forward.1} parent=1 // loop_header_branch
      %27 = sbr.rel (%p25) target = $region8
    $region5: #{hfnet_glob_forward.1} parent=1 // loop_body
      %s29 = ssub.s32 %s24, 1
      %s30 = ssub.s32 %s24, 2
      %s31 = sadd.s32 %s24, 1
      %s32 = ssub.s32 %s24, %s31
      %p33 = scmp.eq.s32.totalorder %s32, 0
      %s35 = sadd.s32 %s34, 1
      %s36 = scalar_select %p33, %s34, %s35
      %p39 = pneg %p33
      %p40 = scmp.eq.s32.totalorder %s24, 3
      %p41 = por %p39, %p40
      %p42 = scmp.ne.s32.totalorder %s34, %s37
      %p43 = scmp.eq.s32.totalorder %s24, 0
      %p44 = por %p42, %p43
      %p45 = scmp.ne.s32.totalorder %s34, %s37
      %p46 = scmp.eq.s32.totalorder %s29, 3
      %p47 = por %p45, %p46
      %p48 = scmp.ne.s32.totalorder %s37, %s38
      %p49 = scmp.eq.s32.totalorder %s29, 0
      %p50 = por %p48, %p49
      %p51 = scmp.ne.s32.totalorder %s37, %s38
      %p52 = scmp.eq.s32.totalorder %s30, 3
      %p53 = por %p51, %p52
      %p55 = scmp.ne.s32.totalorder %s38, %s54
      %p56 = scmp.eq.s32.totalorder %s30, 0
      %p57 = por %p55, %p56
      %s58 = ssub.s32 %s24, %s31
      %p59 = scmp.eq.s32.totalorder %s58, 0
      %s61 = sadd.s32 %s60, 1
      %s62 = scalar_select %p59, %s60, %s61
      %p65 = pneg %p59
      %p66 = scmp.eq.s32.totalorder %s24, 3
      %p67 = por %p65, %p66
      %p68 = scmp.ne.s32.totalorder %s60, %s63
      %p69 = scmp.eq.s32.totalorder %s24, 0
      %p70 = por %p68, %p69
      %p71 = scmp.ne.s32.totalorder %s60, %s63
      %p72 = scmp.eq.s32.totalorder %s29, 3
      %p73 = por %p71, %p72
      %p74 = scmp.ne.s32.totalorder %s63, %s64
      %p75 = scmp.eq.s32.totalorder %s29, 0
      %p76 = por %p74, %p75
      %p77 = scmp.ne.s32.totalorder %s63, %s64
      %p78 = scmp.eq.s32.totalorder %s30, 3
      %p79 = por %p77, %p78
      %p81 = scmp.ne.s32.totalorder %s64, %s80
      %p82 = scmp.eq.s32.totalorder %s30, 0
      %p83 = por %p81, %p82
      %s84 = ssub.s32 %s24, %s31
      %p85 = scmp.eq.s32.totalorder %s84, 0
      %s87 = sadd.s32 %s86, 1
      %s88 = scalar_select %p85, %s86, %s87
      %p91 = pneg %p85
      %p92 = scmp.eq.s32.totalorder %s24, 3
      %p93 = por %p91, %p92
      %p94 = scmp.ne.s32.totalorder %s86, %s89
      %p95 = scmp.eq.s32.totalorder %s24, 0
      %p96 = por %p94, %p95
      %p97 = scmp.ne.s32.totalorder %s86, %s89
      %p98 = scmp.eq.s32.totalorder %s29, 3
      %p99 = por %p97, %p98
      %p100 = scmp.ne.s32.totalorder %s89, %s90
      %p101 = scmp.eq.s32.totalorder %s29, 0
      %p102 = por %p100, %p101
      %p103 = scmp.ne.s32.totalorder %s89, %s90
      %p104 = scmp.eq.s32.totalorder %s30, 3
      %p105 = por %p103, %p104
      %p107 = scmp.ne.s32.totalorder %s90, %s106
      %p108 = scmp.eq.s32.totalorder %s30, 0
      %p109 = por %p107, %p108
      %s111 = sadd.s32 %s110, 1
      %p114 = scmp.eq.s32.totalorder %s24, 3
      %p115 = scmp.ne.s32.totalorder %s110, %s112
      %p116 = scmp.eq.s32.totalorder %s24, 0
      %p117 = por %p115, %p116
      %p118 = scmp.ne.s32.totalorder %s110, %s112
      %p119 = scmp.eq.s32.totalorder %s29, 3
      %p120 = por %p118, %p119
      %p121 = scmp.ne.s32.totalorder %s112, %s113
      %p122 = scmp.eq.s32.totalorder %s29, 0
      %p123 = por %p121, %p122
      %p124 = scmp.ne.s32.totalorder %s112, %s113
      %p125 = scmp.eq.s32.totalorder %s30, 3
      %p126 = por %p124, %p125
      %p128 = scmp.ne.s32.totalorder %s113, %s127
      %p129 = scmp.eq.s32.totalorder %s30, 0
      %p130 = por %p128, %p129
      %s132 = sadd.s32 %s131, 1
      %p135 = scmp.eq.s32.totalorder %s24, 3
      %p136 = scmp.ne.s32.totalorder %s131, %s133
      %p137 = scmp.eq.s32.totalorder %s24, 0
      %p138 = por %p136, %p137
      %p139 = scmp.ne.s32.totalorder %s131, %s133
      %p140 = scmp.eq.s32.totalorder %s29, 3
      %p141 = por %p139, %p140
      %p142 = scmp.ne.s32.totalorder %s133, %s134
      %p143 = scmp.eq.s32.totalorder %s29, 0
      %p144 = por %p142, %p143
      %p145 = scmp.ne.s32.totalorder %s133, %s134
      %p146 = scmp.eq.s32.totalorder %s30, 3
      %p147 = por %p145, %p146
      %p149 = scmp.ne.s32.totalorder %s134, %s148
      %p150 = scmp.eq.s32.totalorder %s30, 0
      %p151 = por %p149, %p150
      %s153 = sadd.s32 %s152, 1
      %p156 = scmp.eq.s32.totalorder %s24, 3
      %p157 = scmp.ne.s32.totalorder %s152, %s154
      %p158 = scmp.eq.s32.totalorder %s24, 0
      %p159 = por %p157, %p158
      %p160 = scmp.ne.s32.totalorder %s152, %s154
      %p161 = scmp.eq.s32.totalorder %s29, 3
      %p162 = por %p160, %p161
      %p163 = scmp.ne.s32.totalorder %s154, %s155
      %p164 = scmp.eq.s32.totalorder %s29, 0
      %p165 = por %p163, %p164
      %p166 = scmp.ne.s32.totalorder %s154, %s155
      %p167 = scmp.eq.s32.totalorder %s30, 3
      %p168 = por %p166, %p167
      %p170 = scmp.ne.s32.totalorder %s155, %s169
      %p171 = scmp.eq.s32.totalorder %s30, 0
      %p172 = por %p170, %p171
      %s174 = sadd.s32 %s173, 1
      %p177 = scmp.eq.s32.totalorder %s24, 3
      %p178 = scmp.ne.s32.totalorder %s173, %s175
      %p179 = scmp.eq.s32.totalorder %s24, 0
      %p180 = por %p178, %p179
      %p181 = scmp.ne.s32.totalorder %s173, %s175
      %p182 = scmp.eq.s32.totalorder %s29, 3
      %p183 = por %p181, %p182
      %p184 = scmp.ne.s32.totalorder %s175, %s176
      %p185 = scmp.eq.s32.totalorder %s29, 0
      %p186 = por %p184, %p185
      %p187 = scmp.ne.s32.totalorder %s175, %s176
      %p188 = scmp.eq.s32.totalorder %s30, 3
      %p189 = por %p187, %p188
      %p191 = scmp.ne.s32.totalorder %s176, %s190
      %p192 = scmp.eq.s32.totalorder %s30, 0
      %p193 = por %p191, %p192
      %s195 = sadd.s32 %s194, 1
      %p198 = scmp.eq.s32.totalorder %s24, 3
      %p199 = scmp.ne.s32.totalorder %s194, %s196
      %p200 = scmp.eq.s32.totalorder %s24, 0
      %p201 = por %p199, %p200
      %p202 = scmp.ne.s32.totalorder %s194, %s196
      %p203 = scmp.eq.s32.totalorder %s29, 3
      %p204 = por %p202, %p203
      %p205 = scmp.ne.s32.totalorder %s196, %s197
      %p206 = scmp.eq.s32.totalorder %s29, 0
      %p207 = por %p205, %p206
      %p208 = scmp.ne.s32.totalorder %s196, %s197
      %p209 = scmp.eq.s32.totalorder %s30, 3
      %p210 = por %p208, %p209
      %p212 = scmp.ne.s32.totalorder %s197, %s211
      %p213 = scmp.eq.s32.totalorder %s30, 0
      %p214 = por %p212, %p213
      %s216 = sadd.s32 %s215, 1
      %p219 = scmp.eq.s32.totalorder %s24, 3
      %p220 = scmp.ne.s32.totalorder %s215, %s217
      %p221 = scmp.eq.s32.totalorder %s24, 0
      %p222 = por %p220, %p221
      %p223 = scmp.ne.s32.totalorder %s215, %s217
      %p224 = scmp.eq.s32.totalorder %s29, 3
      %p225 = por %p223, %p224
      %p226 = scmp.ne.s32.totalorder %s217, %s218
      %p227 = scmp.eq.s32.totalorder %s29, 0
      %p228 = por %p226, %p227
      %p229 = scmp.ne.s32.totalorder %s217, %s218
      %p230 = scmp.eq.s32.totalorder %s30, 3
      %p231 = por %p229, %p230
      %p233 = scmp.ne.s32.totalorder %s218, %s232
      %p234 = scmp.eq.s32.totalorder %s30, 0
      %p235 = por %p233, %p234
      %p236 = scmp.le.s32.totalorder 1, %s24
      %p237 = scmp.lt.s32.totalorder %s24, 5
      %p238 = pnand %p236, %p237
      %p239 = pneg %p238
      // Predicated region
      $region9: #{hfnet_glob_forward.1} parent=5 // pred_check
        _
      $region10: #{hfnet_glob_forward.1} parent=5 // pred_check_branch
        %241 = sbr.rel (%p238) target = $region12
      $region11: #{hfnet_glob_forward.1} parent=5 // pred_region
        %s242 = ssub.s32 %s24, 1
        // Predicated region
        $region13: #{hfnet_glob_forward.1} parent=11 // pred_check
          %p243 = pneg %p123
        $region14: #{hfnet_glob_forward.1} parent=11 // pred_check_branch
          %245 = sbr.rel (%p243) target = $region16
        $region15: #{hfnet_glob_forward.1} parent=11 // pred_region
          %s247 = ssub.s32 32, 32
          %248 = vsyncadd [#allocation14], %s247
          %s250 = sshll.u32 [#allocation13], 4
          %s251 = int_to_ptr.vmem [resolvable:$true] %s250
          %253 = dma.hbm_to_vmem [thread:$0]  %s3, 32, %s251, [#allocation14]
        $region16: #{hfnet_glob_forward.1} parent=11 // pred_fallthru
          _
        // Predicated region
        $region17: #{hfnet_glob_forward.1} parent=11 // pred_check
          %p254 = pneg %p144
        $region18: #{hfnet_glob_forward.1} parent=11 // pred_check_branch
          %256 = sbr.rel (%p254) target = $region20
        $region19: #{hfnet_glob_forward.1} parent=11 // pred_region
          %s258 = ssub.s32 4096, 4096
          %259 = vsyncadd [#allocation14], %s258
          %s260 = sshll.u32 [#allocation15], 4
          %s261 = int_to_ptr.vmem [resolvable:$true] %s260
          %266 = dma.hbm_to_vmem [thread:$0]  %s4, 4096, %s261, [#allocation14], 128, 128, 8
        $region20: #{hfnet_glob_forward.1} parent=11 // pred_fallthru
          _
        // Predicated region
        $region21: #{hfnet_glob_forward.1} parent=11 // pred_check
          %p267 = pneg %p165
        $region22: #{hfnet_glob_forward.1} parent=11 // pred_check_branch
          %269 = sbr.rel (%p267) target = $region24
        $region23: #{hfnet_glob_forward.1} parent=11 // pred_region
          %s271 = ssub.s32 4096, 4096
          %272 = vsyncadd [#allocation17], %s271
          %s273 = sshll.u32 [#allocation16], 4
          %s274 = int_to_ptr.vmem [resolvable:$true] %s273
          %279 = dma.hbm_to_vmem [thread:$0]  %s5, 4096, %s274, [#allocation17], 128, 128, 8
        $region24: #{hfnet_glob_forward.1} parent=11 // pred_fallthru
          _
        // Predicated region
        $region25: #{hfnet_glob_forward.1} parent=11 // pred_check
          %p280 = pneg %p186
        $region26: #{hfnet_glob_forward.1} parent=11 // pred_check_branch
          %282 = sbr.rel (%p280) target = $region28
        $region27: #{hfnet_glob_forward.1} parent=11 // pred_region
          %s284 = ssub.s32 32, 32
          %285 = vsyncadd [#allocation17], %s284
          %s287 = sshll.u32 [#allocation18], 4
          %s288 = int_to_ptr.vmem [resolvable:$true] %s287
          %290 = dma.hbm_to_vmem [thread:$0]  %s6, 32, %s288, [#allocation17]
        $region28: #{hfnet_glob_forward.1} parent=11 // pred_fallthru
          _
      $region12: #{hfnet_glob_forward.1} parent=5 // pred_fallthru
        _
      %p291 = scmp.lt.s32.totalorder %s24, 4
      // Predicated region
      $region29: #{hfnet_glob_forward.1} parent=5 // pred_check
        %p292 = pneg %p291
      $region30: #{hfnet_glob_forward.1} parent=5 // pred_check_branch
        %294 = sbr.rel (%p292) target = $region32
      $region31: #{hfnet_glob_forward.1} parent=5 // pred_region
        // Predicated region
        $region33: #{hfnet_glob_forward.1} parent=31 // pred_check
          %p295 = pneg %p44
        $region34: #{hfnet_glob_forward.1} parent=31 // pred_check_branch
          %297 = sbr.rel (%p295) target = $region36
        $region35: #{hfnet_glob_forward.1} parent=31 // pred_region
          %s298 = sand.u32 %s34, 1
          %s299 = scalar_lea.sflag [#allocation8], %s298
          %s300 = sand.u32 %s34, 1
          %s301 = smul.addr %s300, 64
          %s302 = scalar_lea.vmem [#allocation7], %s301
          %s303 = smul.u32 8, %s24
          %s305 = ssub.s32 1024, 1024
          %306 = vsyncadd %s299, %s305
          %s307 = smul.addr %s303, 128
          %s308 = scalar_lea.hbm %s0, %s307
          %s310 = sshll.u32 %s302, 4
          %s311 = int_to_ptr.vmem [resolvable:$true] %s310
          %313 = dma.hbm_to_vmem [thread:$0]  %s308, 1024, %s311, %s299
        $region36: #{hfnet_glob_forward.1} parent=31 // pred_fallthru
          _
        // Predicated region
        $region37: #{hfnet_glob_forward.1} parent=31 // pred_check
          %p314 = pneg %p70
        $region38: #{hfnet_glob_forward.1} parent=31 // pred_check_branch
          %316 = sbr.rel (%p314) target = $region40
        $region39: #{hfnet_glob_forward.1} parent=31 // pred_region
          %s317 = sand.u32 %s24, 1
          %s318 = scalar_lea.sflag [#allocation11], %s317
          %s319 = sand.u32 %s60, 1
          %s320 = smul.addr %s319, 64
          %s321 = scalar_lea.vmem [#allocation10], %s320
          %s322 = smul.u32 8, %s24
          %s324 = ssub.s32 1024, 1024
          %325 = vsyncadd %s318, %s324
          %s326 = smul.addr %s322, 128
          %s327 = scalar_lea.hbm %s1, %s326
          %s329 = sshll.u32 %s321, 4
          %s330 = int_to_ptr.vmem [resolvable:$true] %s329
          %332 = dma.hbm_to_vmem [thread:$0]  %s327, 1024, %s330, %s318
        $region40: #{hfnet_glob_forward.1} parent=31 // pred_fallthru
          _
        // Predicated region
        $region41: #{hfnet_glob_forward.1} parent=31 // pred_check
          %p333 = pneg %p96
        $region42: #{hfnet_glob_forward.1} parent=31 // pred_check_branch
          %335 = sbr.rel (%p333) target = $region44
        $region43: #{hfnet_glob_forward.1} parent=31 // pred_region
          %s336 = sand.u32 %s24, 1
          %s337 = scalar_lea.sflag [#allocation11], %s336
          %s338 = sand.u32 %s86, 1
          %s339 = smul.addr %s338, 1024
          %s340 = scalar_lea.vmem [#allocation12], %s339
          %s341 = smul.u32 128, %s24
          %s343 = ssub.s32 16384, 16384
          %344 = vsyncadd %s337, %s343
          %s345 = smul.addr %s341, 2
          %s346 = smul.addr %s345, 64
          %s347 = scalar_lea.hbm %s2, %s346
          %s348 = sshll.u32 %s340, 4
          %s349 = int_to_ptr.vmem [resolvable:$true] %s348
          %354 = dma.hbm_to_vmem [thread:$0]  %s347, 16384, %s349, %s337, 128, 128, 8
        $region44: #{hfnet_glob_forward.1} parent=31 // pred_fallthru
          _
      $region32: #{hfnet_glob_forward.1} parent=5 // pred_fallthru
        _
      %p355 = scmp.le.s32.totalorder 1, %s24
      %p356 = scmp.lt.s32.totalorder %s24, 5
      %p357 = pnand %p355, %p356
      %p358 = pneg %p357
      // Predicated region
      $region45: #{hfnet_glob_forward.1} parent=5 // pred_check
        _
      $region46: #{hfnet_glob_forward.1} parent=5 // pred_check_branch
        %360 = sbr.rel (%p357) target = $region48
      $region47: #{hfnet_glob_forward.1} parent=5 // pred_region
        %s361 = ssub.s32 %s24, 1
        %s362 = sand.u32 %s37, 1
        %s363 = scalar_lea.sflag [#allocation8], %s362
        %s364 = sand.u32 %s37, 1
        %s365 = smul.addr %s364, 64
        %s366 = scalar_lea.vmem [#allocation7], %s365
        // Predicated region
        $region49: #{hfnet_glob_forward.1} parent=47 // pred_check
          %p367 = pneg %p50
        $region50: #{hfnet_glob_forward.1} parent=47 // pred_check_branch
          %369 = sbr.rel (%p367) target = $region52
        $region51: #{hfnet_glob_forward.1} parent=47 // pred_region
          %370 = dma.done %s363, 1024
        $region52: #{hfnet_glob_forward.1} parent=47 // pred_fallthru
          _
        %s371 = sand.u32 %s29, 1
        %s372 = scalar_lea.sflag [#allocation11], %s371
        %s373 = sand.u32 %s63, 1
        %s374 = smul.addr %s373, 64
        %s375 = scalar_lea.vmem [#allocation10], %s374
        // Predicated region
        $region53: #{hfnet_glob_forward.1} parent=47 // pred_check
          %p376 = pneg %p76
        $region54: #{hfnet_glob_forward.1} parent=47 // pred_check_branch
          %378 = sbr.rel (%p376) target = $region56
        $region55: #{hfnet_glob_forward.1} parent=47 // pred_region
          %379 = dma.done %s372, 1024
        $region56: #{hfnet_glob_forward.1} parent=47 // pred_fallthru
          _
        %s380 = sand.u32 %s29, 1
        %s381 = scalar_lea.sflag [#allocation11], %s380
        %s382 = sand.u32 %s89, 1
        %s383 = smul.addr %s382, 1024
        %s384 = scalar_lea.vmem [#allocation12], %s383
        // Predicated region
        $region57: #{hfnet_glob_forward.1} parent=47 // pred_check
          %p385 = pneg %p102
        $region58: #{hfnet_glob_forward.1} parent=47 // pred_check_branch
          %387 = sbr.rel (%p385) target = $region60
        $region59: #{hfnet_glob_forward.1} parent=47 // pred_region
          %388 = dma.done %s381, 16384
        $region60: #{hfnet_glob_forward.1} parent=47 // pred_fallthru
          _
        // Predicated region
        $region61: #{hfnet_glob_forward.1} parent=47 // pred_check
          %p389 = pneg %p123
        $region62: #{hfnet_glob_forward.1} parent=47 // pred_check_branch
          %391 = sbr.rel (%p389) target = $region64
        $region63: #{hfnet_glob_forward.1} parent=47 // pred_region
          %392 = dma.done [#allocation14], 32
        $region64: #{hfnet_glob_forward.1} parent=47 // pred_fallthru
          _
        // Predicated region
        $region65: #{hfnet_glob_forward.1} parent=47 // pred_check
          %p393 = pneg %p144
        $region66: #{hfnet_glob_forward.1} parent=47 // pred_check_branch
          %395 = sbr.rel (%p393) target = $region68
        $region67: #{hfnet_glob_forward.1} parent=47 // pred_region
          %396 = dma.done [#allocation14], 4096
        $region68: #{hfnet_glob_forward.1} parent=47 // pred_fallthru
          _
        // Predicated region
        $region69: #{hfnet_glob_forward.1} parent=47 // pred_check
          %p397 = pneg %p165
        $region70: #{hfnet_glob_forward.1} parent=47 // pred_check_branch
          %399 = sbr.rel (%p397) target = $region72
        $region71: #{hfnet_glob_forward.1} parent=47 // pred_region
          %400 = dma.done [#allocation17], 4096
        $region72: #{hfnet_glob_forward.1} parent=47 // pred_fallthru
          _
        // Predicated region
        $region73: #{hfnet_glob_forward.1} parent=47 // pred_check
          %p401 = pneg %p186
        $region74: #{hfnet_glob_forward.1} parent=47 // pred_check_branch
          %403 = sbr.rel (%p401) target = $region76
        $region75: #{hfnet_glob_forward.1} parent=47 // pred_region
          %404 = dma.done [#allocation17], 32
        $region76: #{hfnet_glob_forward.1} parent=47 // pred_fallthru
          _
        %s405 = sand.u32 %s37, 1
        %s406 = scalar_lea.sflag [#allocation8], %s405
        %s407 = sand.u32 %s37, 1
        %s408 = smul.addr %s407, 64
        %s409 = scalar_lea.vmem [#allocation7], %s408
        %p410 = pneg %p50
        %p411 = pneg %p47
        %s412 = sand.u32 %s29, 1
        %s413 = scalar_lea.sflag [#allocation11], %s412
        %s414 = sand.u32 %s63, 1
        %s415 = smul.addr %s414, 64
        %s416 = scalar_lea.vmem [#allocation10], %s415
        %p417 = pneg %p76
        %p418 = pneg %p73
        %s419 = sand.u32 %s29, 1
        %s420 = scalar_lea.sflag [#allocation11], %s419
        %s421 = sand.u32 %s89, 1
        %s422 = smul.addr %s421, 1024
        %s423 = scalar_lea.vmem [#allocation12], %s422
        %p424 = pneg %p102
        %p425 = pneg %p99
        %p426 = pneg %p123
        %p427 = pneg %p120
        %p428 = pneg %p144
        %p429 = pneg %p141
        %p430 = pneg %p165
        %p431 = pneg %p162
        %p432 = pneg %p186
        %p433 = pneg %p183
        %p434 = pneg %p207
        %p435 = pneg %p204
        %p436 = pneg %p228
        %p437 = pneg %p225
        %s438 = smul.u32 8, %s29
        %s439 = smul.u32 8, %s29
        %s440 = smul.u32 128, %s29
        %p441 = scmp.eq.s32.totalorder %s29, 0
        // Predicated region
        $region77: #{hfnet_glob_forward.1} parent=47 // pred_check
          %p442 = pneg %p441
        $region78: #{hfnet_glob_forward.1} parent=47 // pred_check_branch
          %444 = sbr.rel (%p442) target = $region80
        $region79: #{hfnet_glob_forward.1} parent=47 // pred_region
          %445 = vst [vmem:[#allocation2] sm:$0xff] 0.0
          %446 = vst [vmem:[#allocation2 + $0x8] sm:$0xff] 0.0
          %447 = vst [vmem:[#allocation3] sm:$0xff] 0.0
          %448 = vst [vmem:[#allocation3 + $0x8] sm:$0xff] 0.0
          %vm449 = vcmask 7168
          %450 = vst.msk [vmem:[#allocation4] sm:$0xff] %vm449, 0.0
          %451 = vst.msk [vmem:[#allocation5] sm:$0xff] %vm449, 0.0
          %452 = vst.msk [vmem:[#allocation6] sm:$0xff] %vm449, 0.0
        $region80: #{hfnet_glob_forward.1} parent=47 // pred_fallthru
          _
        %v453 = vld [vmem:[%s366] sm:$0xff]
        %v454 = vld [vmem:[%s366 + $0x8] sm:$0xff]
        %v455 = vld [vmem:[%s366 + $0x10] sm:$0xff]
        %v456 = vld [vmem:[%s366 + $0x18] sm:$0xff]
        %v457 = vld [vmem:[%s366 + $0x20] sm:$0xff]
        %v458 = vld [vmem:[%s366 + $0x28] sm:$0xff]
        %v459 = vld [vmem:[%s366 + $0x30] sm:$0xff]
        %v460 = vld [vmem:[%s366 + $0x38] sm:$0xff]
        %v461 = vld [vmem:[%s375] sm:$0xff]
        %v462 = vld [vmem:[%s375 + $0x8] sm:$0xff]
        %v463 = vld [vmem:[%s375 + $0x10] sm:$0xff]
        %v464 = vld [vmem:[%s375 + $0x18] sm:$0xff]
        %v465 = vld [vmem:[%s375 + $0x20] sm:$0xff]
        %v466 = vld [vmem:[%s375 + $0x28] sm:$0xff]
        %v467 = vld [vmem:[%s375 + $0x30] sm:$0xff]
        %v468 = vld [vmem:[%s375 + $0x38] sm:$0xff]
        %v469 = vld [vmem:[#allocation4] sm:$0xff]
        %v470 = vmul.f32 %v453, %v461
        %v471 = vmul.f32 %v454, %v462
        %v472 = vmul.f32 %v455, %v463
        %v473 = vmul.f32 %v456, %v464
        %v474 = vmul.f32 %v457, %v465
        %v475 = vmul.f32 %v458, %v466
        %v476 = vmul.f32 %v459, %v467
        %v477 = vmul.f32 %v460, %v468
        %v478 = vadd.f32 %v470, %v471
        %v479 = vadd.f32 %v478, %v472
        %v480 = vadd.f32 %v479, %v473
        %v481 = vadd.f32 %v480, %v474
        %v482 = vadd.f32 %v481, %v475
        %v483 = vadd.f32 %v482, %v476
        %v484 = vadd.f32 %v483, %v477
        %485 = vadd.xlane.f32.xlu0 %v484
        %v486 = vpop.xlane.xlu0 %485
        %v487 = vadd.f32 %v469, %v486
        %vm488 = vcmask 7168
        %489 = vst.msk [vmem:[#allocation4] sm:$0xff] %vm488, %v487
        %v490 = vld [vmem:[#allocation5] sm:$0xff]
        %v491 = vmul.f32 %v453, %v453
        %v492 = vmul.f32 %v454, %v454
        %v493 = vmul.f32 %v455, %v455
        %v494 = vmul.f32 %v456, %v456
        %v495 = vmul.f32 %v457, %v457
        %v496 = vmul.f32 %v458, %v458
        %v497 = vmul.f32 %v459, %v459
        %v498 = vmul.f32 %v460, %v460
        %v499 = vadd.f32 %v491, %v492
        %v500 = vadd.f32 %v499, %v493
        %v501 = vadd.f32 %v500, %v494
        %v502 = vadd.f32 %v501, %v495
        %v503 = vadd.f32 %v502, %v496
        %v504 = vadd.f32 %v503, %v497
        %v505 = vadd.f32 %v504, %v498
        %506 = vadd.xlane.f32.xlu0 %v505
        %v507 = vpop.xlane.xlu0 %506
        %v508 = vadd.f32 %v490, %v507
        %509 = vst.msk [vmem:[#allocation5] sm:$0xff] %vm488, %v508
        %v510 = vld [vmem:[#allocation6] sm:$0xff]
        %v511 = vmul.f32 %v461, %v461
        %v512 = vmul.f32 %v462, %v462
        %v513 = vmul.f32 %v463, %v463
        %v514 = vmul.f32 %v464, %v464
        %v515 = vmul.f32 %v465, %v465
        %v516 = vmul.f32 %v466, %v466
        %v517 = vmul.f32 %v467, %v467
        %v518 = vmul.f32 %v468, %v468
        %v519 = vadd.f32 %v511, %v512
        %v520 = vadd.f32 %v519, %v513
        %v521 = vadd.f32 %v520, %v514
        %v522 = vadd.f32 %v521, %v515
        %v523 = vadd.f32 %v522, %v516
        %v524 = vadd.f32 %v523, %v517
        %v525 = vadd.f32 %v524, %v518
        %526 = vadd.xlane.f32.xlu0 %v525
        %v527 = vpop.xlane.xlu0 %526
        %v528 = vadd.f32 %v510, %v527
        %529 = vst.msk [vmem:[#allocation6] sm:$0xff] %vm488, %v528
        %v530 = vld [vmem:[%s384] sm:$0xff]
        %v531 = vld [vmem:[%s384 + $0x8] sm:$0xff]
        %v532 = vld [vmem:[%s384 + $0x10] sm:$0xff]
        %v533 = vld [vmem:[%s384 + $0x18] sm:$0xff]
        %v534 = vld [vmem:[%s384 + $0x20] sm:$0xff]
        %v535 = vld [vmem:[%s384 + $0x28] sm:$0xff]
        %v536 = vld [vmem:[%s384 + $0x30] sm:$0xff]
        %v537 = vld [vmem:[%s384 + $0x38] sm:$0xff]
        %v538 = vld [vmem:[%s384 + $0x40] sm:$0xff]
        %v539 = vld [vmem:[%s384 + $0x48] sm:$0xff]
        %v540 = vld [vmem:[%s384 + $0x50] sm:$0xff]
        %v541 = vld [vmem:[%s384 + $0x58] sm:$0xff]
        %v542 = vld [vmem:[%s384 + $0x60] sm:$0xff]
        %v543 = vld [vmem:[%s384 + $0x68] sm:$0xff]
        %v544 = vld [vmem:[%s384 + $0x70] sm:$0xff]
        %v545 = vld [vmem:[%s384 + $0x78] sm:$0xff]
        %v546 = vld [vmem:[%s384 + $0x80] sm:$0xff]
        %v547 = vld [vmem:[%s384 + $0x88] sm:$0xff]
        %v548 = vld [vmem:[%s384 + $0x90] sm:$0xff]
        %v549 = vld [vmem:[%s384 + $0x98] sm:$0xff]
        %v550 = vld [vmem:[%s384 + $0xa0] sm:$0xff]
        %v551 = vld [vmem:[%s384 + $0xa8] sm:$0xff]
        %v552 = vld [vmem:[%s384 + $0xb0] sm:$0xff]
        %v553 = vld [vmem:[%s384 + $0xb8] sm:$0xff]
        %v554 = vld [vmem:[%s384 + $0xc0] sm:$0xff]
        %v555 = vld [vmem:[%s384 + $0xc8] sm:$0xff]
        %v556 = vld [vmem:[%s384 + $0xd0] sm:$0xff]
        %v557 = vld [vmem:[%s384 + $0xd8] sm:$0xff]
        %v558 = vld [vmem:[%s384 + $0xe0] sm:$0xff]
        %v559 = vld [vmem:[%s384 + $0xe8] sm:$0xff]
        %v560 = vld [vmem:[%s384 + $0xf0] sm:$0xff]
        %v561 = vld [vmem:[%s384 + $0xf8] sm:$0xff]
        %v562 = vld [vmem:[%s384 + $0x100] sm:$0xff]
        %v563 = vld [vmem:[%s384 + $0x108] sm:$0xff]
        %v564 = vld [vmem:[%s384 + $0x110] sm:$0xff]
        %v565 = vld [vmem:[%s384 + $0x118] sm:$0xff]
        %v566 = vld [vmem:[%s384 + $0x120] sm:$0xff]
        %v567 = vld [vmem:[%s384 + $0x128] sm:$0xff]
        %v568 = vld [vmem:[%s384 + $0x130] sm:$0xff]
        %v569 = vld [vmem:[%s384 + $0x138] sm:$0xff]
        %v570 = vld [vmem:[%s384 + $0x140] sm:$0xff]
        %v571 = vld [vmem:[%s384 + $0x148] sm:$0xff]
        %v572 = vld [vmem:[%s384 + $0x150] sm:$0xff]
        %v573 = vld [vmem:[%s384 + $0x158] sm:$0xff]
        %v574 = vld [vmem:[%s384 + $0x160] sm:$0xff]
        %v575 = vld [vmem:[%s384 + $0x168] sm:$0xff]
        %v576 = vld [vmem:[%s384 + $0x170] sm:$0xff]
        %v577 = vld [vmem:[%s384 + $0x178] sm:$0xff]
        %v578 = vld [vmem:[%s384 + $0x180] sm:$0xff]
        %v579 = vld [vmem:[%s384 + $0x188] sm:$0xff]
        %v580 = vld [vmem:[%s384 + $0x190] sm:$0xff]
        %v581 = vld [vmem:[%s384 + $0x198] sm:$0xff]
        %v582 = vld [vmem:[%s384 + $0x1a0] sm:$0xff]
        %v583 = vld [vmem:[%s384 + $0x1a8] sm:$0xff]
        %v584 = vld [vmem:[%s384 + $0x1b0] sm:$0xff]
        %v585 = vld [vmem:[%s384 + $0x1b8] sm:$0xff]
        %v586 = vld [vmem:[%s384 + $0x1c0] sm:$0xff]
        %v587 = vld [vmem:[%s384 + $0x1c8] sm:$0xff]
        %v588 = vld [vmem:[%s384 + $0x1d0] sm:$0xff]
        %v589 = vld [vmem:[%s384 + $0x1d8] sm:$0xff]
        %v590 = vld [vmem:[%s384 + $0x1e0] sm:$0xff]
        %v591 = vld [vmem:[%s384 + $0x1e8] sm:$0xff]
        %v592 = vld [vmem:[%s384 + $0x1f0] sm:$0xff]
        %v593 = vld [vmem:[%s384 + $0x1f8] sm:$0xff]
        %v594 = vld [vmem:[%s384 + $0x200] sm:$0xff]
        %v595 = vld [vmem:[%s384 + $0x208] sm:$0xff]
        %v596 = vld [vmem:[%s384 + $0x210] sm:$0xff]
        %v597 = vld [vmem:[%s384 + $0x218] sm:$0xff]
        %v598 = vld [vmem:[%s384 + $0x220] sm:$0xff]
        %v599 = vld [vmem:[%s384 + $0x228] sm:$0xff]
        %v600 = vld [vmem:[%s384 + $0x230] sm:$0xff]
        %v601 = vld [vmem:[%s384 + $0x238] sm:$0xff]
        %v602 = vld [vmem:[%s384 + $0x240] sm:$0xff]
        %v603 = vld [vmem:[%s384 + $0x248] sm:$0xff]
        %v604 = vld [vmem:[%s384 + $0x250] sm:$0xff]
        %v605 = vld [vmem:[%s384 + $0x258] sm:$0xff]
        %v606 = vld [vmem:[%s384 + $0x260] sm:$0xff]
        %v607 = vld [vmem:[%s384 + $0x268] sm:$0xff]
        %v608 = vld [vmem:[%s384 + $0x270] sm:$0xff]
        %v609 = vld [vmem:[%s384 + $0x278] sm:$0xff]
        %v610 = vld [vmem:[%s384 + $0x280] sm:$0xff]
        %v611 = vld [vmem:[%s384 + $0x288] sm:$0xff]
        %v612 = vld [vmem:[%s384 + $0x290] sm:$0xff]
        %v613 = vld [vmem:[%s384 + $0x298] sm:$0xff]
        %v614 = vld [vmem:[%s384 + $0x2a0] sm:$0xff]
        %v615 = vld [vmem:[%s384 + $0x2a8] sm:$0xff]
        %v616 = vld [vmem:[%s384 + $0x2b0] sm:$0xff]
        %v617 = vld [vmem:[%s384 + $0x2b8] sm:$0xff]
        %v618 = vld [vmem:[%s384 + $0x2c0] sm:$0xff]
        %v619 = vld [vmem:[%s384 + $0x2c8] sm:$0xff]
        %v620 = vld [vmem:[%s384 + $0x2d0] sm:$0xff]
        %v621 = vld [vmem:[%s384 + $0x2d8] sm:$0xff]
        %v622 = vld [vmem:[%s384 + $0x2e0] sm:$0xff]
        %v623 = vld [vmem:[%s384 + $0x2e8] sm:$0xff]
        %v624 = vld [vmem:[%s384 + $0x2f0] sm:$0xff]
        %v625 = vld [vmem:[%s384 + $0x2f8] sm:$0xff]
        %v626 = vld [vmem:[%s384 + $0x300] sm:$0xff]
        %v627 = vld [vmem:[%s384 + $0x308] sm:$0xff]
        %v628 = vld [vmem:[%s384 + $0x310] sm:$0xff]
        %v629 = vld [vmem:[%s384 + $0x318] sm:$0xff]
        %v630 = vld [vmem:[%s384 + $0x320] sm:$0xff]
        %v631 = vld [vmem:[%s384 + $0x328] sm:$0xff]
        %v632 = vld [vmem:[%s384 + $0x330] sm:$0xff]
        %v633 = vld [vmem:[%s384 + $0x338] sm:$0xff]
        %v634 = vld [vmem:[%s384 + $0x340] sm:$0xff]
        %v635 = vld [vmem:[%s384 + $0x348] sm:$0xff]
        %v636 = vld [vmem:[%s384 + $0x350] sm:$0xff]
        %v637 = vld [vmem:[%s384 + $0x358] sm:$0xff]
        %v638 = vld [vmem:[%s384 + $0x360] sm:$0xff]
        %v639 = vld [vmem:[%s384 + $0x368] sm:$0xff]
        %v640 = vld [vmem:[%s384 + $0x370] sm:$0xff]
        %v641 = vld [vmem:[%s384 + $0x378] sm:$0xff]
        %v642 = vld [vmem:[%s384 + $0x380] sm:$0xff]
        %v643 = vld [vmem:[%s384 + $0x388] sm:$0xff]
        %v644 = vld [vmem:[%s384 + $0x390] sm:$0xff]
        %v645 = vld [vmem:[%s384 + $0x398] sm:$0xff]
        %v646 = vld [vmem:[%s384 + $0x3a0] sm:$0xff]
        %v647 = vld [vmem:[%s384 + $0x3a8] sm:$0xff]
        %v648 = vld [vmem:[%s384 + $0x3b0] sm:$0xff]
        %v649 = vld [vmem:[%s384 + $0x3b8] sm:$0xff]
        %v650 = vld [vmem:[%s384 + $0x3c0] sm:$0xff]
        %v651 = vld [vmem:[%s384 + $0x3c8] sm:$0xff]
        %v652 = vld [vmem:[%s384 + $0x3d0] sm:$0xff]
        %v653 = vld [vmem:[%s384 + $0x3d8] sm:$0xff]
        %v654 = vld [vmem:[%s384 + $0x3e0] sm:$0xff]
        %v655 = vld [vmem:[%s384 + $0x3e8] sm:$0xff]
        %v656 = vld [vmem:[%s384 + $0x3f0] sm:$0xff]
        %v657 = vld [vmem:[%s384 + $0x3f8] sm:$0xff]
        %v658 = vld [vmem:[#allocation2] sm:$0xff]
        %v659 = vld [vmem:[#allocation2 + $0x8] sm:$0xff]
        %v660 = vpack.c.bf16 %v453, %v453
        %v661 = vpack.c.bf16 %v454, %v454
        %v662 = vpack.c.bf16 %v455, %v455
        %v663 = vpack.c.bf16 %v456, %v456
        %v664 = vpack.c.bf16 %v457, %v457
        %v665 = vpack.c.bf16 %v458, %v458
        %v666 = vpack.c.bf16 %v459, %v459
        %v667 = vpack.c.bf16 %v460, %v460
        %v796 = vunpack.c.l.b16 %v530
        %v797 = vunpack.c.h.b16 %v530
        %v798 = vunpack.c.l.b16 %v531
        %v799 = vunpack.c.h.b16 %v531
        %v800 = vunpack.c.l.b16 %v532
        %v801 = vunpack.c.h.b16 %v532
        %v802 = vunpack.c.l.b16 %v533
        %v803 = vunpack.c.h.b16 %v533
        %v804 = vunpack.c.l.b16 %v534
        %v805 = vunpack.c.h.b16 %v534
        %v806 = vunpack.c.l.b16 %v535
        %v807 = vunpack.c.h.b16 %v535
        %v808 = vunpack.c.l.b16 %v536
        %v809 = vunpack.c.h.b16 %v536
        %v810 = vunpack.c.l.b16 %v537
        %v811 = vunpack.c.h.b16 %v537
        %v812 = vunpack.c.l.b16 %v538
        %v813 = vunpack.c.h.b16 %v538
        %v814 = vunpack.c.l.b16 %v539
        %v815 = vunpack.c.h.b16 %v539
        %v816 = vunpack.c.l.b16 %v540
        %v817 = vunpack.c.h.b16 %v540
        %v818 = vunpack.c.l.b16 %v541
        %v819 = vunpack.c.h.b16 %v541
        %v820 = vunpack.c.l.b16 %v542
        %v821 = vunpack.c.h.b16 %v542
        %v822 = vunpack.c.l.b16 %v543
        %v823 = vunpack.c.h.b16 %v543
        %v824 = vunpack.c.l.b16 %v544
        %v825 = vunpack.c.h.b16 %v544
        %v826 = vunpack.c.l.b16 %v545
        %v827 = vunpack.c.h.b16 %v545
        %v828 = vunpack.c.l.b16 %v546
        %v829 = vunpack.c.h.b16 %v546
        %v830 = vunpack.c.l.b16 %v547
        %v831 = vunpack.c.h.b16 %v547
        %v832 = vunpack.c.l.b16 %v548
        %v833 = vunpack.c.h.b16 %v548
        %v834 = vunpack.c.l.b16 %v549
        %v835 = vunpack.c.h.b16 %v549
        %v836 = vunpack.c.l.b16 %v550
        %v837 = vunpack.c.h.b16 %v550
        %v838 = vunpack.c.l.b16 %v551
        %v839 = vunpack.c.h.b16 %v551
        %v840 = vunpack.c.l.b16 %v552
        %v841 = vunpack.c.h.b16 %v552
        %v842 = vunpack.c.l.b16 %v553
        %v843 = vunpack.c.h.b16 %v553
        %v844 = vunpack.c.l.b16 %v554
        %v845 = vunpack.c.h.b16 %v554
        %v846 = vunpack.c.l.b16 %v555
        %v847 = vunpack.c.h.b16 %v555
        %v848 = vunpack.c.l.b16 %v556
        %v849 = vunpack.c.h.b16 %v556
        %v850 = vunpack.c.l.b16 %v557
        %v851 = vunpack.c.h.b16 %v557
        %v852 = vunpack.c.l.b16 %v558
        %v853 = vunpack.c.h.b16 %v558
        %v854 = vunpack.c.l.b16 %v559
        %v855 = vunpack.c.h.b16 %v559
        %v856 = vunpack.c.l.b16 %v560
        %v857 = vunpack.c.h.b16 %v560
        %v858 = vunpack.c.l.b16 %v561
        %v859 = vunpack.c.h.b16 %v561
        %v860 = vunpack.c.l.b16 %v562
        %v861 = vunpack.c.h.b16 %v562
        %v862 = vunpack.c.l.b16 %v563
        %v863 = vunpack.c.h.b16 %v563
        %v864 = vunpack.c.l.b16 %v564
        %v865 = vunpack.c.h.b16 %v564
        %v866 = vunpack.c.l.b16 %v565
        %v867 = vunpack.c.h.b16 %v565
        %v868 = vunpack.c.l.b16 %v566
        %v869 = vunpack.c.h.b16 %v566
        %v870 = vunpack.c.l.b16 %v567
        %v871 = vunpack.c.h.b16 %v567
        %v872 = vunpack.c.l.b16 %v568
        %v873 = vunpack.c.h.b16 %v568
        %v874 = vunpack.c.l.b16 %v569
        %v875 = vunpack.c.h.b16 %v569
        %v876 = vunpack.c.l.b16 %v570
        %v877 = vunpack.c.h.b16 %v570
        %v878 = vunpack.c.l.b16 %v571
        %v879 = vunpack.c.h.b16 %v571
        %v880 = vunpack.c.l.b16 %v572
        %v881 = vunpack.c.h.b16 %v572
        %v882 = vunpack.c.l.b16 %v573
        %v883 = vunpack.c.h.b16 %v573
        %v884 = vunpack.c.l.b16 %v574
        %v885 = vunpack.c.h.b16 %v574
        %v886 = vunpack.c.l.b16 %v575
        %v887 = vunpack.c.h.b16 %v575
        %v888 = vunpack.c.l.b16 %v576
        %v889 = vunpack.c.h.b16 %v576
        %v890 = vunpack.c.l.b16 %v577
        %v891 = vunpack.c.h.b16 %v577
        %v892 = vunpack.c.l.b16 %v578
        %v893 = vunpack.c.h.b16 %v578
        %v894 = vunpack.c.l.b16 %v579
        %v895 = vunpack.c.h.b16 %v579
        %v896 = vunpack.c.l.b16 %v580
        %v897 = vunpack.c.h.b16 %v580
        %v898 = vunpack.c.l.b16 %v581
        %v899 = vunpack.c.h.b16 %v581
        %v900 = vunpack.c.l.b16 %v582
        %v901 = vunpack.c.h.b16 %v582
        %v902 = vunpack.c.l.b16 %v583
        %v903 = vunpack.c.h.b16 %v583
        %v904 = vunpack.c.l.b16 %v584
        %v905 = vunpack.c.h.b16 %v584
        %v906 = vunpack.c.l.b16 %v585
        %v907 = vunpack.c.h.b16 %v585
        %v908 = vunpack.c.l.b16 %v586
        %v909 = vunpack.c.h.b16 %v586
        %v910 = vunpack.c.l.b16 %v587
        %v911 = vunpack.c.h.b16 %v587
        %v912 = vunpack.c.l.b16 %v588
        %v913 = vunpack.c.h.b16 %v588
        %v914 = vunpack.c.l.b16 %v589
        %v915 = vunpack.c.h.b16 %v589
        %v916 = vunpack.c.l.b16 %v590
        %v917 = vunpack.c.h.b16 %v590
        %v918 = vunpack.c.l.b16 %v591
        %v919 = vunpack.c.h.b16 %v591
        %v920 = vunpack.c.l.b16 %v592
        %v921 = vunpack.c.h.b16 %v592
        %v922 = vunpack.c.l.b16 %v593
        %v923 = vunpack.c.h.b16 %v593
        %v924 = vunpack.c.l.b16 %v594
        %v925 = vunpack.c.h.b16 %v594
        %v926 = vunpack.c.l.b16 %v595
        %v927 = vunpack.c.h.b16 %v595
        %v928 = vunpack.c.l.b16 %v596
        %v929 = vunpack.c.h.b16 %v596
        %v930 = vunpack.c.l.b16 %v597
        %v931 = vunpack.c.h.b16 %v597
        %v932 = vunpack.c.l.b16 %v598
        %v933 = vunpack.c.h.b16 %v598
        %v934 = vunpack.c.l.b16 %v599
        %v935 = vunpack.c.h.b16 %v599
        %v936 = vunpack.c.l.b16 %v600
        %v937 = vunpack.c.h.b16 %v600
        %v938 = vunpack.c.l.b16 %v601
        %v939 = vunpack.c.h.b16 %v601
        %v940 = vunpack.c.l.b16 %v602
        %v941 = vunpack.c.h.b16 %v602
        %v942 = vunpack.c.l.b16 %v603
        %v943 = vunpack.c.h.b16 %v603
        %v944 = vunpack.c.l.b16 %v604
        %v945 = vunpack.c.h.b16 %v604
        %v946 = vunpack.c.l.b16 %v605
        %v947 = vunpack.c.h.b16 %v605
        %v948 = vunpack.c.l.b16 %v606
        %v949 = vunpack.c.h.b16 %v606
        %v950 = vunpack.c.l.b16 %v607
        %v951 = vunpack.c.h.b16 %v607
        %v952 = vunpack.c.l.b16 %v608
        %v953 = vunpack.c.h.b16 %v608
        %v954 = vunpack.c.l.b16 %v609
        %v955 = vunpack.c.h.b16 %v609
        %v956 = vunpack.c.l.b16 %v610
        %v957 = vunpack.c.h.b16 %v610
        %v958 = vunpack.c.l.b16 %v611
        %v959 = vunpack.c.h.b16 %v611
        %v960 = vunpack.c.l.b16 %v612
        %v961 = vunpack.c.h.b16 %v612
        %v962 = vunpack.c.l.b16 %v613
        %v963 = vunpack.c.h.b16 %v613
        %v964 = vunpack.c.l.b16 %v614
        %v965 = vunpack.c.h.b16 %v614
        %v966 = vunpack.c.l.b16 %v615
        %v967 = vunpack.c.h.b16 %v615
        %v968 = vunpack.c.l.b16 %v616
        %v969 = vunpack.c.h.b16 %v616
        %v970 = vunpack.c.l.b16 %v617
        %v971 = vunpack.c.h.b16 %v617
        %v972 = vunpack.c.l.b16 %v618
        %v973 = vunpack.c.h.b16 %v618
        %v974 = vunpack.c.l.b16 %v619
        %v975 = vunpack.c.h.b16 %v619
        %v976 = vunpack.c.l.b16 %v620
        %v977 = vunpack.c.h.b16 %v620
        %v978 = vunpack.c.l.b16 %v621
        %v979 = vunpack.c.h.b16 %v621
        %v980 = vunpack.c.l.b16 %v622
        %v981 = vunpack.c.h.b16 %v622
        %v982 = vunpack.c.l.b16 %v623
        %v983 = vunpack.c.h.b16 %v623
        %v984 = vunpack.c.l.b16 %v624
        %v985 = vunpack.c.h.b16 %v624
        %v986 = vunpack.c.l.b16 %v625
        %v987 = vunpack.c.h.b16 %v625
        %v988 = vunpack.c.l.b16 %v626
        %v989 = vunpack.c.h.b16 %v626
        %v990 = vunpack.c.l.b16 %v627
        %v991 = vunpack.c.h.b16 %v627
        %v992 = vunpack.c.l.b16 %v628
        %v993 = vunpack.c.h.b16 %v628
        %v994 = vunpack.c.l.b16 %v629
        %v995 = vunpack.c.h.b16 %v629
        %v996 = vunpack.c.l.b16 %v630
        %v997 = vunpack.c.h.b16 %v630
        %v998 = vunpack.c.l.b16 %v631
        %v999 = vunpack.c.h.b16 %v631
        %v1000 = vunpack.c.l.b16 %v632
        %v1001 = vunpack.c.h.b16 %v632
        %v1002 = vunpack.c.l.b16 %v633
        %v1003 = vunpack.c.h.b16 %v633
        %v1004 = vunpack.c.l.b16 %v634
        %v1005 = vunpack.c.h.b16 %v634
        %v1006 = vunpack.c.l.b16 %v635
        %v1007 = vunpack.c.h.b16 %v635
        %v1008 = vunpack.c.l.b16 %v636
        %v1009 = vunpack.c.h.b16 %v636
        %v1010 = vunpack.c.l.b16 %v637
        %v1011 = vunpack.c.h.b16 %v637
        %v1012 = vunpack.c.l.b16 %v638
        %v1013 = vunpack.c.h.b16 %v638
        %v1014 = vunpack.c.l.b16 %v639
        %v1015 = vunpack.c.h.b16 %v639
        %v1016 = vunpack.c.l.b16 %v640
        %v1017 = vunpack.c.h.b16 %v640
        %v1018 = vunpack.c.l.b16 %v641
        %v1019 = vunpack.c.h.b16 %v641
        %v1020 = vunpack.c.l.b16 %v642
        %v1021 = vunpack.c.h.b16 %v642
        %v1022 = vunpack.c.l.b16 %v643
        %v1023 = vunpack.c.h.b16 %v643
        %v1024 = vunpack.c.l.b16 %v644
        %v1025 = vunpack.c.h.b16 %v644
        %v1026 = vunpack.c.l.b16 %v645
        %v1027 = vunpack.c.h.b16 %v645
        %v1028 = vunpack.c.l.b16 %v646
        %v1029 = vunpack.c.h.b16 %v646
        %v1030 = vunpack.c.l.b16 %v647
        %v1031 = vunpack.c.h.b16 %v647
        %v1032 = vunpack.c.l.b16 %v648
        %v1033 = vunpack.c.h.b16 %v648
        %v1034 = vunpack.c.l.b16 %v649
        %v1035 = vunpack.c.h.b16 %v649
        %v1036 = vunpack.c.l.b16 %v650
        %v1037 = vunpack.c.h.b16 %v650
        %v1038 = vunpack.c.l.b16 %v651
        %v1039 = vunpack.c.h.b16 %v651
        %v1040 = vunpack.c.l.b16 %v652
        %v1041 = vunpack.c.h.b16 %v652
        %v1042 = vunpack.c.l.b16 %v653
        %v1043 = vunpack.c.h.b16 %v653
        %v1044 = vunpack.c.l.b16 %v654
        %v1045 = vunpack.c.h.b16 %v654
        %v1046 = vunpack.c.l.b16 %v655
        %v1047 = vunpack.c.h.b16 %v655
        %v1048 = vunpack.c.l.b16 %v656
        %v1049 = vunpack.c.h.b16 %v656
        %v1050 = vunpack.c.l.b16 %v657
        %v1051 = vunpack.c.h.b16 %v657
        %v1052 = vpack.c.b16 %v798, %v796
        %v1053 = vpack.c.b16 %v799, %v797
        %v1054 = vpack.c.b16 %v802, %v800
        %v1055 = vpack.c.b16 %v803, %v801
        %v1056 = vpack.c.b16 %v806, %v804
        %v1057 = vpack.c.b16 %v807, %v805
        %v1058 = vpack.c.b16 %v810, %v808
        %v1059 = vpack.c.b16 %v811, %v809
        %v1060 = vpack.c.b16 %v814, %v812
        %v1061 = vpack.c.b16 %v815, %v813
        %v1062 = vpack.c.b16 %v818, %v816
        %v1063 = vpack.c.b16 %v819, %v817
        %v1064 = vpack.c.b16 %v822, %v820
        %v1065 = vpack.c.b16 %v823, %v821
        %v1066 = vpack.c.b16 %v826, %v824
        %v1067 = vpack.c.b16 %v827, %v825
        %v1068 = vpack.c.b16 %v830, %v828
        %v1069 = vpack.c.b16 %v831, %v829
        %v1070 = vpack.c.b16 %v834, %v832
        %v1071 = vpack.c.b16 %v835, %v833
        %v1072 = vpack.c.b16 %v838, %v836
        %v1073 = vpack.c.b16 %v839, %v837
        %v1074 = vpack.c.b16 %v842, %v840
        %v1075 = vpack.c.b16 %v843, %v841
        %v1076 = vpack.c.b16 %v846, %v844
        %v1077 = vpack.c.b16 %v847, %v845
        %v1078 = vpack.c.b16 %v850, %v848
        %v1079 = vpack.c.b16 %v851, %v849
        %v1080 = vpack.c.b16 %v854, %v852
        %v1081 = vpack.c.b16 %v855, %v853
        %v1082 = vpack.c.b16 %v858, %v856
        %v1083 = vpack.c.b16 %v859, %v857
        %v1084 = vpack.c.b16 %v862, %v860
        %v1085 = vpack.c.b16 %v863, %v861
        %v1086 = vpack.c.b16 %v866, %v864
        %v1087 = vpack.c.b16 %v867, %v865
        %v1088 = vpack.c.b16 %v870, %v868
        %v1089 = vpack.c.b16 %v871, %v869
        %v1090 = vpack.c.b16 %v874, %v872
        %v1091 = vpack.c.b16 %v875, %v873
        %v1092 = vpack.c.b16 %v878, %v876
        %v1093 = vpack.c.b16 %v879, %v877
        %v1094 = vpack.c.b16 %v882, %v880
        %v1095 = vpack.c.b16 %v883, %v881
        %v1096 = vpack.c.b16 %v886, %v884
        %v1097 = vpack.c.b16 %v887, %v885
        %v1098 = vpack.c.b16 %v890, %v888
        %v1099 = vpack.c.b16 %v891, %v889
        %v1100 = vpack.c.b16 %v894, %v892
        %v1101 = vpack.c.b16 %v895, %v893
        %v1102 = vpack.c.b16 %v898, %v896
        %v1103 = vpack.c.b16 %v899, %v897
        %v1104 = vpack.c.b16 %v902, %v900
        %v1105 = vpack.c.b16 %v903, %v901
        %v1106 = vpack.c.b16 %v906, %v904
        %v1107 = vpack.c.b16 %v907, %v905
        %v1108 = vpack.c.b16 %v910, %v908
        %v1109 = vpack.c.b16 %v911, %v909
        %v1110 = vpack.c.b16 %v914, %v912
        %v1111 = vpack.c.b16 %v915, %v913
        %v1112 = vpack.c.b16 %v918, %v916
        %v1113 = vpack.c.b16 %v919, %v917
        %v1114 = vpack.c.b16 %v922, %v920
        %v1115 = vpack.c.b16 %v923, %v921
        %v1116 = vpack.c.b16 %v926, %v924
        %v1117 = vpack.c.b16 %v927, %v925
        %v1118 = vpack.c.b16 %v930, %v928
        %v1119 = vpack.c.b16 %v931, %v929
        %v1120 = vpack.c.b16 %v934, %v932
        %v1121 = vpack.c.b16 %v935, %v933
        %v1122 = vpack.c.b16 %v938, %v936
        %v1123 = vpack.c.b16 %v939, %v937
        %v1124 = vpack.c.b16 %v942, %v940
        %v1125 = vpack.c.b16 %v943, %v941
        %v1126 = vpack.c.b16 %v946, %v944
        %v1127 = vpack.c.b16 %v947, %v945
        %v1128 = vpack.c.b16 %v950, %v948
        %v1129 = vpack.c.b16 %v951, %v949
        %v1130 = vpack.c.b16 %v954, %v952
        %v1131 = vpack.c.b16 %v955, %v953
        %v1132 = vpack.c.b16 %v958, %v956
        %v1133 = vpack.c.b16 %v959, %v957
        %v1134 = vpack.c.b16 %v962, %v960
        %v1135 = vpack.c.b16 %v963, %v961
        %v1136 = vpack.c.b16 %v966, %v964
        %v1137 = vpack.c.b16 %v967, %v965
        %v1138 = vpack.c.b16 %v970, %v968
        %v1139 = vpack.c.b16 %v971, %v969
        %v1140 = vpack.c.b16 %v974, %v972
        %v1141 = vpack.c.b16 %v975, %v973
        %v1142 = vpack.c.b16 %v978, %v976
        %v1143 = vpack.c.b16 %v979, %v977
        %v1144 = vpack.c.b16 %v982, %v980
        %v1145 = vpack.c.b16 %v983, %v981
        %v1146 = vpack.c.b16 %v986, %v984
        %v1147 = vpack.c.b16 %v987, %v985
        %v1148 = vpack.c.b16 %v990, %v988
        %v1149 = vpack.c.b16 %v991, %v989
        %v1150 = vpack.c.b16 %v994, %v992
        %v1151 = vpack.c.b16 %v995, %v993
        %v1152 = vpack.c.b16 %v998, %v996
        %v1153 = vpack.c.b16 %v999, %v997
        %v1154 = vpack.c.b16 %v1002, %v1000
        %v1155 = vpack.c.b16 %v1003, %v1001
        %v1156 = vpack.c.b16 %v1006, %v1004
        %v1157 = vpack.c.b16 %v1007, %v1005
        %v1158 = vpack.c.b16 %v1010, %v1008
        %v1159 = vpack.c.b16 %v1011, %v1009
        %v1160 = vpack.c.b16 %v1014, %v1012
        %v1161 = vpack.c.b16 %v1015, %v1013
        %v1162 = vpack.c.b16 %v1018, %v1016
        %v1163 = vpack.c.b16 %v1019, %v1017
        %v1164 = vpack.c.b16 %v1022, %v1020
        %v1165 = vpack.c.b16 %v1023, %v1021
        %v1166 = vpack.c.b16 %v1026, %v1024
        %v1167 = vpack.c.b16 %v1027, %v1025
        %v1168 = vpack.c.b16 %v1030, %v1028
        %v1169 = vpack.c.b16 %v1031, %v1029
        %v1170 = vpack.c.b16 %v1034, %v1032
        %v1171 = vpack.c.b16 %v1035, %v1033
        %v1172 = vpack.c.b16 %v1038, %v1036
        %v1173 = vpack.c.b16 %v1039, %v1037
        %v1174 = vpack.c.b16 %v1042, %v1040
        %v1175 = vpack.c.b16 %v1043, %v1041
        %v1176 = vpack.c.b16 %v1046, %v1044
        %v1177 = vpack.c.b16 %v1047, %v1045
        %v1178 = vpack.c.b16 %v1050, %v1048
        %v1179 = vpack.c.b16 %v1051, %v1049
        %1308 = vmatprep.subr.bf16.mxu0 %v1067
        %1309 = vmatpush1.bf16.msra.mxu0 %v1066
        %1310 = vmatprep.subr.bf16.mxu0 %v1065
        %1311 = vmatpush1.bf16.msra.mxu0 %v1064
        %1312 = vmatprep.subr.bf16.mxu0 %v1063
        %1313 = vmatpush1.bf16.msra.mxu0 %v1062
        %1314 = vmatprep.subr.bf16.mxu0 %v1061
        %1315 = vmatpush1.bf16.msra.mxu0 %v1060
        %1316 = vmatprep.subr.bf16.mxu0 %v1059
        %1317 = vmatpush1.bf16.msra.mxu0 %v1058
        %1318 = vmatprep.subr.bf16.mxu0 %v1057
        %1319 = vmatpush1.bf16.msra.mxu0 %v1056
        %1320 = vmatprep.subr.bf16.mxu0 %v1055
        %1321 = vmatpush1.bf16.msra.mxu0 %v1054
        %1322 = vmatprep.subr.bf16.mxu0 %v1053
        %1323 = vmatpush1.bf16.msra.mxu0 %v1052
        %1324 = vmatprep.subr.bf16.mxu0 %v1083
        %1325 = vmatpush2.bf16.msra.mxu0 %v1082
        %1326 = vmatprep.subr.bf16.mxu0 %v1081
        %1327 = vmatpush2.bf16.msra.mxu0 %v1080
        %1328 = vmatprep.subr.bf16.mxu0 %v1079
        %1329 = vmatpush2.bf16.msra.mxu0 %v1078
        %1330 = vmatprep.subr.bf16.mxu0 %v1077
        %1331 = vmatpush2.bf16.msra.mxu0 %v1076
        %1332 = vmatprep.subr.bf16.mxu0 %v1075
        %1333 = vmatpush2.bf16.msra.mxu0 %v1074
        %1334 = vmatprep.subr.bf16.mxu0 %v1073
        %1335 = vmatpush2.bf16.msra.mxu0 %v1072
        %1336 = vmatprep.subr.bf16.mxu0 %v1071
        %1337 = vmatpush2.bf16.msra.mxu0 %v1070
        %1338 = vmatprep.subr.bf16.mxu0 %v1069
        %1339 = vmatpush2.bf16.msra.mxu0 %v1068
        %1340 = vmatprep.mubr.bf16.mxu0 %v661
        %1341 = vmatmul.mubr.bf16.gmra.mxu0 %v660
        %v1342 = vpop.f32.mrf.mxu0
        %v1343 = vadd.f32 0.0, %v1342
        %v1344 = vpop.f32.mrf.mxu0
        %v1345 = vadd.f32 0.0, %v1344
        %v1346 = vpop.f32.mrf.mxu0
        %v1347 = vpop.f32.mrf.mxu0
        %1348 = vdwg.mxu0
        %1349 = vmatprep.subr.bf16.mxu0 %v1099
        %1350 = vmatpush1.bf16.msra.mxu0 %v1098
        %1351 = vmatprep.subr.bf16.mxu0 %v1097
        %1352 = vmatpush1.bf16.msra.mxu0 %v1096
        %1353 = vmatprep.subr.bf16.mxu0 %v1095
        %1354 = vmatpush1.bf16.msra.mxu0 %v1094
        %1355 = vmatprep.subr.bf16.mxu0 %v1093
        %1356 = vmatpush1.bf16.msra.mxu0 %v1092
        %1357 = vmatprep.subr.bf16.mxu0 %v1091
        %1358 = vmatpush1.bf16.msra.mxu0 %v1090
        %1359 = vmatprep.subr.bf16.mxu0 %v1089
        %1360 = vmatpush1.bf16.msra.mxu0 %v1088
        %1361 = vmatprep.subr.bf16.mxu0 %v1087
        %1362 = vmatpush1.bf16.msra.mxu0 %v1086
        %1363 = vmatprep.subr.bf16.mxu0 %v1085
        %1364 = vmatpush1.bf16.msra.mxu0 %v1084
        %1365 = vmatprep.subr.bf16.mxu0 %v1115
        %1366 = vmatpush2.bf16.msra.mxu0 %v1114
        %1367 = vmatprep.subr.bf16.mxu0 %v1113
        %1368 = vmatpush2.bf16.msra.mxu0 %v1112
        %1369 = vmatprep.subr.bf16.mxu0 %v1111
        %1370 = vmatpush2.bf16.msra.mxu0 %v1110
        %1371 = vmatprep.subr.bf16.mxu0 %v1109
        %1372 = vmatpush2.bf16.msra.mxu0 %v1108
        %1373 = vmatprep.subr.bf16.mxu0 %v1107
        %1374 = vmatpush2.bf16.msra.mxu0 %v1106
        %1375 = vmatprep.subr.bf16.mxu0 %v1105
        %1376 = vmatpush2.bf16.msra.mxu0 %v1104
        %1377 = vmatprep.subr.bf16.mxu0 %v1103
        %1378 = vmatpush2.bf16.msra.mxu0 %v1102
        %1379 = vmatprep.subr.bf16.mxu0 %v1101
        %1380 = vmatpush2.bf16.msra.mxu0 %v1100
        %1381 = vmatprep.mubr.bf16.mxu0 %v663
        %1382 = vmatmul.mubr.bf16.gmra.mxu0 %v662
        %v1383 = vpop.f32.mrf.mxu0
        %v1384 = vadd.f32 %v1343, %v1383
        %v1385 = vpop.f32.mrf.mxu0
        %v1386 = vadd.f32 %v1345, %v1385
        %v1387 = vpop.f32.mrf.mxu0
        %v1388 = vpop.f32.mrf.mxu0
        %1389 = vdwg.mxu0
        %1390 = vmatprep.subr.bf16.mxu0 %v1131
        %1391 = vmatpush1.bf16.msra.mxu0 %v1130
        %1392 = vmatprep.subr.bf16.mxu0 %v1129
        %1393 = vmatpush1.bf16.msra.mxu0 %v1128
        %1394 = vmatprep.subr.bf16.mxu0 %v1127
        %1395 = vmatpush1.bf16.msra.mxu0 %v1126
        %1396 = vmatprep.subr.bf16.mxu0 %v1125
        %1397 = vmatpush1.bf16.msra.mxu0 %v1124
        %1398 = vmatprep.subr.bf16.mxu0 %v1123
        %1399 = vmatpush1.bf16.msra.mxu0 %v1122
        %1400 = vmatprep.subr.bf16.mxu0 %v1121
        %1401 = vmatpush1.bf16.msra.mxu0 %v1120
        %1402 = vmatprep.subr.bf16.mxu0 %v1119
        %1403 = vmatpush1.bf16.msra.mxu0 %v1118
        %1404 = vmatprep.subr.bf16.mxu0 %v1117
        %1405 = vmatpush1.bf16.msra.mxu0 %v1116
        %1406 = vmatprep.subr.bf16.mxu0 %v1147
        %1407 = vmatpush2.bf16.msra.mxu0 %v1146
        %1408 = vmatprep.subr.bf16.mxu0 %v1145
        %1409 = vmatpush2.bf16.msra.mxu0 %v1144
        %1410 = vmatprep.subr.bf16.mxu0 %v1143
        %1411 = vmatpush2.bf16.msra.mxu0 %v1142
        %1412 = vmatprep.subr.bf16.mxu0 %v1141
        %1413 = vmatpush2.bf16.msra.mxu0 %v1140
        %1414 = vmatprep.subr.bf16.mxu0 %v1139
        %1415 = vmatpush2.bf16.msra.mxu0 %v1138
        %1416 = vmatprep.subr.bf16.mxu0 %v1137
        %1417 = vmatpush2.bf16.msra.mxu0 %v1136
        %1418 = vmatprep.subr.bf16.mxu0 %v1135
        %1419 = vmatpush2.bf16.msra.mxu0 %v1134
        %1420 = vmatprep.subr.bf16.mxu0 %v1133
        %1421 = vmatpush2.bf16.msra.mxu0 %v1132
        %1422 = vmatprep.mubr.bf16.mxu0 %v665
        %1423 = vmatmul.mubr.bf16.gmra.mxu0 %v664
        %v1424 = vpop.f32.mrf.mxu0
        %v1425 = vadd.f32 %v1384, %v1424
        %v1426 = vpop.f32.mrf.mxu0
        %v1427 = vadd.f32 %v1386, %v1426
        %v1428 = vpop.f32.mrf.mxu0
        %v1429 = vpop.f32.mrf.mxu0
        %1430 = vdwg.mxu0
        %1431 = vmatprep.subr.bf16.mxu0 %v1163
        %1432 = vmatpush1.bf16.msra.mxu0 %v1162
        %1433 = vmatprep.subr.bf16.mxu0 %v1161
        %1434 = vmatpush1.bf16.msra.mxu0 %v1160
        %1435 = vmatprep.subr.bf16.mxu0 %v1159
        %1436 = vmatpush1.bf16.msra.mxu0 %v1158
        %1437 = vmatprep.subr.bf16.mxu0 %v1157
        %1438 = vmatpush1.bf16.msra.mxu0 %v1156
        %1439 = vmatprep.subr.bf16.mxu0 %v1155
        %1440 = vmatpush1.bf16.msra.mxu0 %v1154
        %1441 = vmatprep.subr.bf16.mxu0 %v1153
        %1442 = vmatpush1.bf16.msra.mxu0 %v1152
        %1443 = vmatprep.subr.bf16.mxu0 %v1151
        %1444 = vmatpush1.bf16.msra.mxu0 %v1150
        %1445 = vmatprep.subr.bf16.mxu0 %v1149
        %1446 = vmatpush1.bf16.msra.mxu0 %v1148
        %1447 = vmatprep.subr.bf16.mxu0 %v1179
        %1448 = vmatpush2.bf16.msra.mxu0 %v1178
        %1449 = vmatprep.subr.bf16.mxu0 %v1177
        %1450 = vmatpush2.bf16.msra.mxu0 %v1176
        %1451 = vmatprep.subr.bf16.mxu0 %v1175
        %1452 = vmatpush2.bf16.msra.mxu0 %v1174
        %1453 = vmatprep.subr.bf16.mxu0 %v1173
        %1454 = vmatpush2.bf16.msra.mxu0 %v1172
        %1455 = vmatprep.subr.bf16.mxu0 %v1171
        %1456 = vmatpush2.bf16.msra.mxu0 %v1170
        %1457 = vmatprep.subr.bf16.mxu0 %v1169
        %1458 = vmatpush2.bf16.msra.mxu0 %v1168
        %1459 = vmatprep.subr.bf16.mxu0 %v1167
        %1460 = vmatpush2.bf16.msra.mxu0 %v1166
        %1461 = vmatprep.subr.bf16.mxu0 %v1165
        %1462 = vmatpush2.bf16.msra.mxu0 %v1164
        %1463 = vmatprep.mubr.bf16.mxu0 %v667
        %1464 = vmatmul.mubr.bf16.gmra.mxu0 %v666
        %v1465 = vpop.f32.mrf.mxu0
        %v1466 = vadd.f32 %v1425, %v1465
        %v1467 = vpop.f32.mrf.mxu0
        %v1468 = vadd.f32 %v1427, %v1467
        %v1469 = vpop.f32.mrf.mxu0
        %v1470 = vpop.f32.mrf.mxu0
        %1471 = vdwg.mxu0
        %v1472 = vadd.f32 %v658, %v1466
        %v1473 = vadd.f32 %v659, %v1468
        %1474 = vst [vmem:[#allocation2] sm:$0xff] %v1472
        %1475 = vst [vmem:[#allocation2 + $0x8] sm:$0xff] %v1473
        %v1476 = vld [vmem:[#allocation3] sm:$0xff]
        %v1477 = vld [vmem:[#allocation3 + $0x8] sm:$0xff]
        %v1478 = vpack.c.bf16 %v461, %v461
        %v1479 = vpack.c.bf16 %v462, %v462
        %v1480 = vpack.c.bf16 %v463, %v463
        %v1481 = vpack.c.bf16 %v464, %v464
        %v1482 = vpack.c.bf16 %v465, %v465
        %v1483 = vpack.c.bf16 %v466, %v466
        %v1484 = vpack.c.bf16 %v467, %v467
        %v1485 = vpack.c.bf16 %v468, %v468
        %1486 = vmatprep.subr.bf16.mxu0 %v1067
        %1487 = vmatpush1.bf16.msra.mxu0 %v1066
        %1488 = vmatprep.subr.bf16.mxu0 %v1065
        %1489 = vmatpush1.bf16.msra.mxu0 %v1064
        %1490 = vmatprep.subr.bf16.mxu0 %v1063
        %1491 = vmatpush1.bf16.msra.mxu0 %v1062
        %1492 = vmatprep.subr.bf16.mxu0 %v1061
        %1493 = vmatpush1.bf16.msra.mxu0 %v1060
        %1494 = vmatprep.subr.bf16.mxu0 %v1059
        %1495 = vmatpush1.bf16.msra.mxu0 %v1058
        %1496 = vmatprep.subr.bf16.mxu0 %v1057
        %1497 = vmatpush1.bf16.msra.mxu0 %v1056
        %1498 = vmatprep.subr.bf16.mxu0 %v1055
        %1499 = vmatpush1.bf16.msra.mxu0 %v1054
        %1500 = vmatprep.subr.bf16.mxu0 %v1053
        %1501 = vmatpush1.bf16.msra.mxu0 %v1052
        %1502 = vmatprep.subr.bf16.mxu0 %v1083
        %1503 = vmatpush2.bf16.msra.mxu0 %v1082
        %1504 = vmatprep.subr.bf16.mxu0 %v1081
        %1505 = vmatpush2.bf16.msra.mxu0 %v1080
        %1506 = vmatprep.subr.bf16.mxu0 %v1079
        %1507 = vmatpush2.bf16.msra.mxu0 %v1078
        %1508 = vmatprep.subr.bf16.mxu0 %v1077
        %1509 = vmatpush2.bf16.msra.mxu0 %v1076
        %1510 = vmatprep.subr.bf16.mxu0 %v1075
        %1511 = vmatpush2.bf16.msra.mxu0 %v1074
        %1512 = vmatprep.subr.bf16.mxu0 %v1073
        %1513 = vmatpush2.bf16.msra.mxu0 %v1072
        %1514 = vmatprep.subr.bf16.mxu0 %v1071
        %1515 = vmatpush2.bf16.msra.mxu0 %v1070
        %1516 = vmatprep.subr.bf16.mxu0 %v1069
        %1517 = vmatpush2.bf16.msra.mxu0 %v1068
        %1518 = vmatprep.mubr.bf16.mxu0 %v1479
        %1519 = vmatmul.mubr.bf16.gmra.mxu0 %v1478
        %v1520 = vpop.f32.mrf.mxu0
        %v1521 = vadd.f32 0.0, %v1520
        %v1522 = vpop.f32.mrf.mxu0
        %v1523 = vadd.f32 0.0, %v1522
        %v1524 = vpop.f32.mrf.mxu0
        %v1525 = vpop.f32.mrf.mxu0
        %1526 = vdwg.mxu0
        %1527 = vmatprep.subr.bf16.mxu0 %v1099
        %1528 = vmatpush1.bf16.msra.mxu0 %v1098
        %1529 = vmatprep.subr.bf16.mxu0 %v1097
        %1530 = vmatpush1.bf16.msra.mxu0 %v1096
        %1531 = vmatprep.subr.bf16.mxu0 %v1095
        %1532 = vmatpush1.bf16.msra.mxu0 %v1094
        %1533 = vmatprep.subr.bf16.mxu0 %v1093
        %1534 = vmatpush1.bf16.msra.mxu0 %v1092
        %1535 = vmatprep.subr.bf16.mxu0 %v1091
        %1536 = vmatpush1.bf16.msra.mxu0 %v1090
        %1537 = vmatprep.subr.bf16.mxu0 %v1089
        %1538 = vmatpush1.bf16.msra.mxu0 %v1088
        %1539 = vmatprep.subr.bf16.mxu0 %v1087
        %1540 = vmatpush1.bf16.msra.mxu0 %v1086
        %1541 = vmatprep.subr.bf16.mxu0 %v1085
        %1542 = vmatpush1.bf16.msra.mxu0 %v1084
        %1543 = vmatprep.subr.bf16.mxu0 %v1115
        %1544 = vmatpush2.bf16.msra.mxu0 %v1114
        %1545 = vmatprep.subr.bf16.mxu0 %v1113
        %1546 = vmatpush2.bf16.msra.mxu0 %v1112
        %1547 = vmatprep.subr.bf16.mxu0 %v1111
        %1548 = vmatpush2.bf16.msra.mxu0 %v1110
        %1549 = vmatprep.subr.bf16.mxu0 %v1109
        %1550 = vmatpush2.bf16.msra.mxu0 %v1108
        %1551 = vmatprep.subr.bf16.mxu0 %v1107
        %1552 = vmatpush2.bf16.msra.mxu0 %v1106
        %1553 = vmatprep.subr.bf16.mxu0 %v1105
        %1554 = vmatpush2.bf16.msra.mxu0 %v1104
        %1555 = vmatprep.subr.bf16.mxu0 %v1103
        %1556 = vmatpush2.bf16.msra.mxu0 %v1102
        %1557 = vmatprep.subr.bf16.mxu0 %v1101
        %1558 = vmatpush2.bf16.msra.mxu0 %v1100
        %1559 = vmatprep.mubr.bf16.mxu0 %v1481
        %1560 = vmatmul.mubr.bf16.gmra.mxu0 %v1480
        %v1561 = vpop.f32.mrf.mxu0
        %v1562 = vadd.f32 %v1521, %v1561
        %v1563 = vpop.f32.mrf.mxu0
        %v1564 = vadd.f32 %v1523, %v1563
        %v1565 = vpop.f32.mrf.mxu0
        %v1566 = vpop.f32.mrf.mxu0
        %1567 = vdwg.mxu0
        %1568 = vmatprep.subr.bf16.mxu0 %v1131
        %1569 = vmatpush1.bf16.msra.mxu0 %v1130
        %1570 = vmatprep.subr.bf16.mxu0 %v1129
        %1571 = vmatpush1.bf16.msra.mxu0 %v1128
        %1572 = vmatprep.subr.bf16.mxu0 %v1127
        %1573 = vmatpush1.bf16.msra.mxu0 %v1126
        %1574 = vmatprep.subr.bf16.mxu0 %v1125
        %1575 = vmatpush1.bf16.msra.mxu0 %v1124
        %1576 = vmatprep.subr.bf16.mxu0 %v1123
        %1577 = vmatpush1.bf16.msra.mxu0 %v1122
        %1578 = vmatprep.subr.bf16.mxu0 %v1121
        %1579 = vmatpush1.bf16.msra.mxu0 %v1120
        %1580 = vmatprep.subr.bf16.mxu0 %v1119
        %1581 = vmatpush1.bf16.msra.mxu0 %v1118
        %1582 = vmatprep.subr.bf16.mxu0 %v1117
        %1583 = vmatpush1.bf16.msra.mxu0 %v1116
        %1584 = vmatprep.subr.bf16.mxu0 %v1147
        %1585 = vmatpush2.bf16.msra.mxu0 %v1146
        %1586 = vmatprep.subr.bf16.mxu0 %v1145
        %1587 = vmatpush2.bf16.msra.mxu0 %v1144
        %1588 = vmatprep.subr.bf16.mxu0 %v1143
        %1589 = vmatpush2.bf16.msra.mxu0 %v1142
        %1590 = vmatprep.subr.bf16.mxu0 %v1141
        %1591 = vmatpush2.bf16.msra.mxu0 %v1140
        %1592 = vmatprep.subr.bf16.mxu0 %v1139
        %1593 = vmatpush2.bf16.msra.mxu0 %v1138
        %1594 = vmatprep.subr.bf16.mxu0 %v1137
        %1595 = vmatpush2.bf16.msra.mxu0 %v1136
        %1596 = vmatprep.subr.bf16.mxu0 %v1135
        %1597 = vmatpush2.bf16.msra.mxu0 %v1134
        %1598 = vmatprep.subr.bf16.mxu0 %v1133
        %1599 = vmatpush2.bf16.msra.mxu0 %v1132
        %1600 = vmatprep.mubr.bf16.mxu0 %v1483
        %1601 = vmatmul.mubr.bf16.gmra.mxu0 %v1482
        %v1602 = vpop.f32.mrf.mxu0
        %v1603 = vadd.f32 %v1562, %v1602
        %v1604 = vpop.f32.mrf.mxu0
        %v1605 = vadd.f32 %v1564, %v1604
        %v1606 = vpop.f32.mrf.mxu0
        %v1607 = vpop.f32.mrf.mxu0
        %1608 = vdwg.mxu0
        %1609 = vmatprep.subr.bf16.mxu0 %v1163
        %1610 = vmatpush1.bf16.msra.mxu0 %v1162
        %1611 = vmatprep.subr.bf16.mxu0 %v1161
        %1612 = vmatpush1.bf16.msra.mxu0 %v1160
        %1613 = vmatprep.subr.bf16.mxu0 %v1159
        %1614 = vmatpush1.bf16.msra.mxu0 %v1158
        %1615 = vmatprep.subr.bf16.mxu0 %v1157
        %1616 = vmatpush1.bf16.msra.mxu0 %v1156
        %1617 = vmatprep.subr.bf16.mxu0 %v1155
        %1618 = vmatpush1.bf16.msra.mxu0 %v1154
        %1619 = vmatprep.subr.bf16.mxu0 %v1153
        %1620 = vmatpush1.bf16.msra.mxu0 %v1152
        %1621 = vmatprep.subr.bf16.mxu0 %v1151
        %1622 = vmatpush1.bf16.msra.mxu0 %v1150
        %1623 = vmatprep.subr.bf16.mxu0 %v1149
        %1624 = vmatpush1.bf16.msra.mxu0 %v1148
        %1625 = vmatprep.subr.bf16.mxu0 %v1179
        %1626 = vmatpush2.bf16.msra.mxu0 %v1178
        %1627 = vmatprep.subr.bf16.mxu0 %v1177
        %1628 = vmatpush2.bf16.msra.mxu0 %v1176
        %1629 = vmatprep.subr.bf16.mxu0 %v1175
        %1630 = vmatpush2.bf16.msra.mxu0 %v1174
        %1631 = vmatprep.subr.bf16.mxu0 %v1173
        %1632 = vmatpush2.bf16.msra.mxu0 %v1172
        %1633 = vmatprep.subr.bf16.mxu0 %v1171
        %1634 = vmatpush2.bf16.msra.mxu0 %v1170
        %1635 = vmatprep.subr.bf16.mxu0 %v1169
        %1636 = vmatpush2.bf16.msra.mxu0 %v1168
        %1637 = vmatprep.subr.bf16.mxu0 %v1167
        %1638 = vmatpush2.bf16.msra.mxu0 %v1166
        %1639 = vmatprep.subr.bf16.mxu0 %v1165
        %1640 = vmatpush2.bf16.msra.mxu0 %v1164
        %1641 = vmatprep.mubr.bf16.mxu0 %v1485
        %1642 = vmatmul.mubr.bf16.gmra.mxu0 %v1484
        %v1643 = vpop.f32.mrf.mxu0
        %v1644 = vadd.f32 %v1603, %v1643
        %v1645 = vpop.f32.mrf.mxu0
        %v1646 = vadd.f32 %v1605, %v1645
        %v1647 = vpop.f32.mrf.mxu0
        %v1648 = vpop.f32.mrf.mxu0
        %1649 = vdwg.mxu0
        %v1650 = vadd.f32 %v1476, %v1644
        %v1651 = vadd.f32 %v1477, %v1646
        %1652 = vst [vmem:[#allocation3] sm:$0xff] %v1650
        %1653 = vst [vmem:[#allocation3 + $0x8] sm:$0xff] %v1651
        %p1654 = scmp.eq.s32.totalorder %s29, 3
        // Predicated region
        $region81: #{hfnet_glob_forward.1} parent=47 // pred_check
          %p1655 = pneg %p1654
        $region82: #{hfnet_glob_forward.1} parent=47 // pred_check_branch
          %1657 = sbr.rel (%p1655) target = $region84
        $region83: #{hfnet_glob_forward.1} parent=47 // pred_region
          %v1658 = vld [vmem:[#allocation5] sm:$0xff]
          %v1659 = vld [vmem:[#allocation6] sm:$0xff]
          %v1660 = vmul.f32 %v1658, %v1659
          %v1661 = vmax.f32 %v1660, 1e-12
          %v1662 = vrsqrt.pop %v1661
          %v1663 = vmul.f32 %v1661, %v1662
          %vm1664 = vcmp.eq.f32.partialorder %v1661, inf
          %v1665 = vsel %vm1664, %v1661, %v1663
          %vm1666 = vcmp.eq.f32.partialorder %v1661, 0.0
          %v1667 = vand.u32 %v1661, 2147483648
          %v1668 = vsel %vm1666, %v1667, %v1665
          %v1669 = vld [vmem:[#allocation4] sm:$0xff]
          %v1670 = vrcp.pop %v1668
          %v1671 = vmul.f32 %v1669, %v1670
          %v1672 = vsub.f32 1.0, %v1671
          %v1673 = vmul.f32 %v1672, 0.5
          %1674 = vst.msk [vmem:[%s8] sm:$0xff] %vm488, %v1673
          %v1675 = vld [vmem:[#allocation2] sm:$0xff]
          %v1676 = vld [vmem:[#allocation2 + $0x8] sm:$0xff]
          %v1677 = vld [vmem:[#allocation13] sm:$0x3]
          %v1679 = vlaneseq
          %v1680 = vshrl.u32 %v1679, 7
          %v1681 = vsub.s32 0, %v1680
          %v1682 = vrot.slane %v1677, %v1681
          %v1683 = vlaneseq
          %v1684 = vshrl.u32 %v1683, 7
          %v1685 = vsub.s32 1, %v1684
          %v1686 = vrot.slane %v1677, %v1685
          %v1689 = vadd.f32 %v1675, %v1682
          %v1690 = vadd.f32 %v1676, %v1686
          %v1691 = vpack.c.bf16 %v1689, %v1689
          %v1692 = vpack.c.bf16 %v1690, %v1690
          %v1693 = vld [vmem:[#allocation3] sm:$0xff]
          %v1694 = vld [vmem:[#allocation3 + $0x8] sm:$0xff]
          %v1695 = vadd.f32 %v1693, %v1682
          %v1696 = vadd.f32 %v1694, %v1686
          %v1697 = vpack.c.bf16 %v1695, %v1695
          %v1698 = vpack.c.bf16 %v1696, %v1696
          %v1699 = vld [vmem:[#allocation15] sm:$0xff]
          %v1700 = vld [vmem:[#allocation15 + $0x8] sm:$0xff]
          %v1701 = vld [vmem:[#allocation15 + $0x10] sm:$0xff]
          %v1702 = vld [vmem:[#allocation15 + $0x18] sm:$0xff]
          %v1703 = vld [vmem:[#allocation15 + $0x20] sm:$0xff]
          %v1704 = vld [vmem:[#allocation15 + $0x28] sm:$0xff]
          %v1705 = vld [vmem:[#allocation15 + $0x30] sm:$0xff]
          %v1706 = vld [vmem:[#allocation15 + $0x38] sm:$0xff]
          %v1707 = vld [vmem:[#allocation15 + $0x40] sm:$0xff]
          %v1708 = vld [vmem:[#allocation15 + $0x48] sm:$0xff]
          %v1709 = vld [vmem:[#allocation15 + $0x50] sm:$0xff]
          %v1710 = vld [vmem:[#allocation15 + $0x58] sm:$0xff]
          %v1711 = vld [vmem:[#allocation15 + $0x60] sm:$0xff]
          %v1712 = vld [vmem:[#allocation15 + $0x68] sm:$0xff]
          %v1713 = vld [vmem:[#allocation15 + $0x70] sm:$0xff]
          %v1714 = vld [vmem:[#allocation15 + $0x78] sm:$0xff]
          %v1715 = vld [vmem:[#allocation15 + $0x80] sm:$0xff]
          %v1716 = vld [vmem:[#allocation15 + $0x88] sm:$0xff]
          %v1717 = vld [vmem:[#allocation15 + $0x90] sm:$0xff]
          %v1718 = vld [vmem:[#allocation15 + $0x98] sm:$0xff]
          %v1719 = vld [vmem:[#allocation15 + $0xa0] sm:$0xff]
          %v1720 = vld [vmem:[#allocation15 + $0xa8] sm:$0xff]
          %v1721 = vld [vmem:[#allocation15 + $0xb0] sm:$0xff]
          %v1722 = vld [vmem:[#allocation15 + $0xb8] sm:$0xff]
          %v1723 = vld [vmem:[#allocation15 + $0xc0] sm:$0xff]
          %v1724 = vld [vmem:[#allocation15 + $0xc8] sm:$0xff]
          %v1725 = vld [vmem:[#allocation15 + $0xd0] sm:$0xff]
          %v1726 = vld [vmem:[#allocation15 + $0xd8] sm:$0xff]
          %v1727 = vld [vmem:[#allocation15 + $0xe0] sm:$0xff]
          %v1728 = vld [vmem:[#allocation15 + $0xe8] sm:$0xff]
          %v1729 = vld [vmem:[#allocation15 + $0xf0] sm:$0xff]
          %v1730 = vld [vmem:[#allocation15 + $0xf8] sm:$0xff]
          %v1731 = vld [vmem:[#allocation16] sm:$0xff]
          %v1732 = vld [vmem:[#allocation16 + $0x8] sm:$0xff]
          %v1733 = vld [vmem:[#allocation16 + $0x10] sm:$0xff]
          %v1734 = vld [vmem:[#allocation16 + $0x18] sm:$0xff]
          %v1735 = vld [vmem:[#allocation16 + $0x20] sm:$0xff]
          %v1736 = vld [vmem:[#allocation16 + $0x28] sm:$0xff]
          %v1737 = vld [vmem:[#allocation16 + $0x30] sm:$0xff]
          %v1738 = vld [vmem:[#allocation16 + $0x38] sm:$0xff]
          %v1739 = vld [vmem:[#allocation16 + $0x40] sm:$0xff]
          %v1740 = vld [vmem:[#allocation16 + $0x48] sm:$0xff]
          %v1741 = vld [vmem:[#allocation16 + $0x50] sm:$0xff]
          %v1742 = vld [vmem:[#allocation16 + $0x58] sm:$0xff]
          %v1743 = vld [vmem:[#allocation16 + $0x60] sm:$0xff]
          %v1744 = vld [vmem:[#allocation16 + $0x68] sm:$0xff]
          %v1745 = vld [vmem:[#allocation16 + $0x70] sm:$0xff]
          %v1746 = vld [vmem:[#allocation16 + $0x78] sm:$0xff]
          %v1747 = vld [vmem:[#allocation16 + $0x80] sm:$0xff]
          %v1748 = vld [vmem:[#allocation16 + $0x88] sm:$0xff]
          %v1749 = vld [vmem:[#allocation16 + $0x90] sm:$0xff]
          %v1750 = vld [vmem:[#allocation16 + $0x98] sm:$0xff]
          %v1751 = vld [vmem:[#allocation16 + $0xa0] sm:$0xff]
          %v1752 = vld [vmem:[#allocation16 + $0xa8] sm:$0xff]
          %v1753 = vld [vmem:[#allocation16 + $0xb0] sm:$0xff]
          %v1754 = vld [vmem:[#allocation16 + $0xb8] sm:$0xff]
          %v1755 = vld [vmem:[#allocation16 + $0xc0] sm:$0xff]
          %v1756 = vld [vmem:[#allocation16 + $0xc8] sm:$0xff]
          %v1757 = vld [vmem:[#allocation16 + $0xd0] sm:$0xff]
          %v1758 = vld [vmem:[#allocation16 + $0xd8] sm:$0xff]
          %v1759 = vld [vmem:[#allocation16 + $0xe0] sm:$0xff]
          %v1760 = vld [vmem:[#allocation16 + $0xe8] sm:$0xff]
          %v1761 = vld [vmem:[#allocation16 + $0xf0] sm:$0xff]
          %v1762 = vld [vmem:[#allocation16 + $0xf8] sm:$0xff]
          %v1795 = vunpack.c.l.b16 %v1731
          %v1796 = vunpack.c.h.b16 %v1731
          %v1797 = vunpack.c.l.b16 %v1732
          %v1798 = vunpack.c.h.b16 %v1732
          %v1799 = vunpack.c.l.b16 %v1733
          %v1800 = vunpack.c.h.b16 %v1733
          %v1801 = vunpack.c.l.b16 %v1734
          %v1802 = vunpack.c.h.b16 %v1734
          %v1803 = vunpack.c.l.b16 %v1735
          %v1804 = vunpack.c.h.b16 %v1735
          %v1805 = vunpack.c.l.b16 %v1736
          %v1806 = vunpack.c.h.b16 %v1736
          %v1807 = vunpack.c.l.b16 %v1737
          %v1808 = vunpack.c.h.b16 %v1737
          %v1809 = vunpack.c.l.b16 %v1738
          %v1810 = vunpack.c.h.b16 %v1738
          %v1811 = vunpack.c.l.b16 %v1739
          %v1812 = vunpack.c.h.b16 %v1739
          %v1813 = vunpack.c.l.b16 %v1740
          %v1814 = vunpack.c.h.b16 %v1740
          %v1815 = vunpack.c.l.b16 %v1741
          %v1816 = vunpack.c.h.b16 %v1741
          %v1817 = vunpack.c.l.b16 %v1742
          %v1818 = vunpack.c.h.b16 %v1742
          %v1819 = vunpack.c.l.b16 %v1743
          %v1820 = vunpack.c.h.b16 %v1743
          %v1821 = vunpack.c.l.b16 %v1744
          %v1822 = vunpack.c.h.b16 %v1744
          %v1823 = vunpack.c.l.b16 %v1745
          %v1824 = vunpack.c.h.b16 %v1745
          %v1825 = vunpack.c.l.b16 %v1746
          %v1826 = vunpack.c.h.b16 %v1746
          %v1827 = vunpack.c.l.b16 %v1747
          %v1828 = vunpack.c.h.b16 %v1747
          %v1829 = vunpack.c.l.b16 %v1748
          %v1830 = vunpack.c.h.b16 %v1748
          %v1831 = vunpack.c.l.b16 %v1749
          %v1832 = vunpack.c.h.b16 %v1749
          %v1833 = vunpack.c.l.b16 %v1750
          %v1834 = vunpack.c.h.b16 %v1750
          %v1835 = vunpack.c.l.b16 %v1751
          %v1836 = vunpack.c.h.b16 %v1751
          %v1837 = vunpack.c.l.b16 %v1752
          %v1838 = vunpack.c.h.b16 %v1752
          %v1839 = vunpack.c.l.b16 %v1753
          %v1840 = vunpack.c.h.b16 %v1753
          %v1841 = vunpack.c.l.b16 %v1754
          %v1842 = vunpack.c.h.b16 %v1754
          %v1843 = vunpack.c.l.b16 %v1755
          %v1844 = vunpack.c.h.b16 %v1755
          %v1845 = vunpack.c.l.b16 %v1756
          %v1846 = vunpack.c.h.b16 %v1756
          %v1847 = vunpack.c.l.b16 %v1757
          %v1848 = vunpack.c.h.b16 %v1757
          %v1849 = vunpack.c.l.b16 %v1758
          %v1850 = vunpack.c.h.b16 %v1758
          %v1851 = vunpack.c.l.b16 %v1759
          %v1852 = vunpack.c.h.b16 %v1759
          %v1853 = vunpack.c.l.b16 %v1760
          %v1854 = vunpack.c.h.b16 %v1760
          %v1855 = vunpack.c.l.b16 %v1761
          %v1856 = vunpack.c.h.b16 %v1761
          %v1857 = vunpack.c.l.b16 %v1762
          %v1858 = vunpack.c.h.b16 %v1762
          %v1859 = vpack.c.b16 %v1797, %v1795
          %v1860 = vpack.c.b16 %v1798, %v1796
          %v1861 = vpack.c.b16 %v1801, %v1799
          %v1862 = vpack.c.b16 %v1802, %v1800
          %v1863 = vpack.c.b16 %v1805, %v1803
          %v1864 = vpack.c.b16 %v1806, %v1804
          %v1865 = vpack.c.b16 %v1809, %v1807
          %v1866 = vpack.c.b16 %v1810, %v1808
          %v1867 = vpack.c.b16 %v1813, %v1811
          %v1868 = vpack.c.b16 %v1814, %v1812
          %v1869 = vpack.c.b16 %v1817, %v1815
          %v1870 = vpack.c.b16 %v1818, %v1816
          %v1871 = vpack.c.b16 %v1821, %v1819
          %v1872 = vpack.c.b16 %v1822, %v1820
          %v1873 = vpack.c.b16 %v1825, %v1823
          %v1874 = vpack.c.b16 %v1826, %v1824
          %v1875 = vpack.c.b16 %v1829, %v1827
          %v1876 = vpack.c.b16 %v1830, %v1828
          %v1877 = vpack.c.b16 %v1833, %v1831
          %v1878 = vpack.c.b16 %v1834, %v1832
          %v1879 = vpack.c.b16 %v1837, %v1835
          %v1880 = vpack.c.b16 %v1838, %v1836
          %v1881 = vpack.c.b16 %v1841, %v1839
          %v1882 = vpack.c.b16 %v1842, %v1840
          %v1883 = vpack.c.b16 %v1845, %v1843
          %v1884 = vpack.c.b16 %v1846, %v1844
          %v1885 = vpack.c.b16 %v1849, %v1847
          %v1886 = vpack.c.b16 %v1850, %v1848
          %v1887 = vpack.c.b16 %v1853, %v1851
          %v1888 = vpack.c.b16 %v1854, %v1852
          %v1889 = vpack.c.b16 %v1857, %v1855
          %v1890 = vpack.c.b16 %v1858, %v1856
          %1923 = vmatprep.subr.bf16.mxu0 %v1874
          %1924 = vmatpush1.bf16.msra.mxu0 %v1873
          %1925 = vmatprep.subr.bf16.mxu0 %v1872
          %1926 = vmatpush1.bf16.msra.mxu0 %v1871
          %1927 = vmatprep.subr.bf16.mxu0 %v1870
          %1928 = vmatpush1.bf16.msra.mxu0 %v1869
          %1929 = vmatprep.subr.bf16.mxu0 %v1868
          %1930 = vmatpush1.bf16.msra.mxu0 %v1867
          %1931 = vmatprep.subr.bf16.mxu0 %v1866
          %1932 = vmatpush1.bf16.msra.mxu0 %v1865
          %1933 = vmatprep.subr.bf16.mxu0 %v1864
          %1934 = vmatpush1.bf16.msra.mxu0 %v1863
          %1935 = vmatprep.subr.bf16.mxu0 %v1862
          %1936 = vmatpush1.bf16.msra.mxu0 %v1861
          %1937 = vmatprep.subr.bf16.mxu0 %v1860
          %1938 = vmatpush1.bf16.msra.mxu0 %v1859
          %1939 = vmatprep.subr.bf16.mxu0 %v1890
          %1940 = vmatpush2.bf16.msra.mxu0 %v1889
          %1941 = vmatprep.subr.bf16.mxu0 %v1888
          %1942 = vmatpush2.bf16.msra.mxu0 %v1887
          %1943 = vmatprep.subr.bf16.mxu0 %v1886
          %1944 = vmatpush2.bf16.msra.mxu0 %v1885
          %1945 = vmatprep.subr.bf16.mxu0 %v1884
          %1946 = vmatpush2.bf16.msra.mxu0 %v1883
          %1947 = vmatprep.subr.bf16.mxu0 %v1882
          %1948 = vmatpush2.bf16.msra.mxu0 %v1881
          %1949 = vmatprep.subr.bf16.mxu0 %v1880
          %1950 = vmatpush2.bf16.msra.mxu0 %v1879
          %1951 = vmatprep.subr.bf16.mxu0 %v1878
          %1952 = vmatpush2.bf16.msra.mxu0 %v1877
          %1953 = vmatprep.subr.bf16.mxu0 %v1876
          %1954 = vmatpush2.bf16.msra.mxu0 %v1875
          %1955 = vmatprep.mubr.bf16.mxu0 %v1698
          %1956 = vmatmul.mubr.bf16.gmra.mxu0 %v1697
          %v1957 = vpop.f32.mrf.mxu0
          %v1958 = vadd.f32 0.0, %v1957
          %v1959 = vpop.f32.mrf.mxu0
          %v1960 = vadd.f32 0.0, %v1959
          %v1961 = vpop.f32.mrf.mxu0
          %v1962 = vpop.f32.mrf.mxu0
          %1963 = vdwg.mxu0
          %v1996 = vunpack.c.l.b16 %v1699
          %v1997 = vunpack.c.h.b16 %v1699
          %v1998 = vunpack.c.l.b16 %v1700
          %v1999 = vunpack.c.h.b16 %v1700
          %v2000 = vunpack.c.l.b16 %v1701
          %v2001 = vunpack.c.h.b16 %v1701
          %v2002 = vunpack.c.l.b16 %v1702
          %v2003 = vunpack.c.h.b16 %v1702
          %v2004 = vunpack.c.l.b16 %v1703
          %v2005 = vunpack.c.h.b16 %v1703
          %v2006 = vunpack.c.l.b16 %v1704
          %v2007 = vunpack.c.h.b16 %v1704
          %v2008 = vunpack.c.l.b16 %v1705
          %v2009 = vunpack.c.h.b16 %v1705
          %v2010 = vunpack.c.l.b16 %v1706
          %v2011 = vunpack.c.h.b16 %v1706
          %v2012 = vunpack.c.l.b16 %v1707
          %v2013 = vunpack.c.h.b16 %v1707
          %v2014 = vunpack.c.l.b16 %v1708
          %v2015 = vunpack.c.h.b16 %v1708
          %v2016 = vunpack.c.l.b16 %v1709
          %v2017 = vunpack.c.h.b16 %v1709
          %v2018 = vunpack.c.l.b16 %v1710
          %v2019 = vunpack.c.h.b16 %v1710
          %v2020 = vunpack.c.l.b16 %v1711
          %v2021 = vunpack.c.h.b16 %v1711
          %v2022 = vunpack.c.l.b16 %v1712
          %v2023 = vunpack.c.h.b16 %v1712
          %v2024 = vunpack.c.l.b16 %v1713
          %v2025 = vunpack.c.h.b16 %v1713
          %v2026 = vunpack.c.l.b16 %v1714
          %v2027 = vunpack.c.h.b16 %v1714
          %v2028 = vunpack.c.l.b16 %v1715
          %v2029 = vunpack.c.h.b16 %v1715
          %v2030 = vunpack.c.l.b16 %v1716
          %v2031 = vunpack.c.h.b16 %v1716
          %v2032 = vunpack.c.l.b16 %v1717
          %v2033 = vunpack.c.h.b16 %v1717
          %v2034 = vunpack.c.l.b16 %v1718
          %v2035 = vunpack.c.h.b16 %v1718
          %v2036 = vunpack.c.l.b16 %v1719
          %v2037 = vunpack.c.h.b16 %v1719
          %v2038 = vunpack.c.l.b16 %v1720
          %v2039 = vunpack.c.h.b16 %v1720
          %v2040 = vunpack.c.l.b16 %v1721
          %v2041 = vunpack.c.h.b16 %v1721
          %v2042 = vunpack.c.l.b16 %v1722
          %v2043 = vunpack.c.h.b16 %v1722
          %v2044 = vunpack.c.l.b16 %v1723
          %v2045 = vunpack.c.h.b16 %v1723
          %v2046 = vunpack.c.l.b16 %v1724
          %v2047 = vunpack.c.h.b16 %v1724
          %v2048 = vunpack.c.l.b16 %v1725
          %v2049 = vunpack.c.h.b16 %v1725
          %v2050 = vunpack.c.l.b16 %v1726
          %v2051 = vunpack.c.h.b16 %v1726
          %v2052 = vunpack.c.l.b16 %v1727
          %v2053 = vunpack.c.h.b16 %v1727
          %v2054 = vunpack.c.l.b16 %v1728
          %v2055 = vunpack.c.h.b16 %v1728
          %v2056 = vunpack.c.l.b16 %v1729
          %v2057 = vunpack.c.h.b16 %v1729
          %v2058 = vunpack.c.l.b16 %v1730
          %v2059 = vunpack.c.h.b16 %v1730
          %v2060 = vpack.c.b16 %v1998, %v1996
          %v2061 = vpack.c.b16 %v1999, %v1997
          %v2062 = vpack.c.b16 %v2002, %v2000
          %v2063 = vpack.c.b16 %v2003, %v2001
          %v2064 = vpack.c.b16 %v2006, %v2004
          %v2065 = vpack.c.b16 %v2007, %v2005
          %v2066 = vpack.c.b16 %v2010, %v2008
          %v2067 = vpack.c.b16 %v2011, %v2009
          %v2068 = vpack.c.b16 %v2014, %v2012
          %v2069 = vpack.c.b16 %v2015, %v2013
          %v2070 = vpack.c.b16 %v2018, %v2016
          %v2071 = vpack.c.b16 %v2019, %v2017
          %v2072 = vpack.c.b16 %v2022, %v2020
          %v2073 = vpack.c.b16 %v2023, %v2021
          %v2074 = vpack.c.b16 %v2026, %v2024
          %v2075 = vpack.c.b16 %v2027, %v2025
          %v2076 = vpack.c.b16 %v2030, %v2028
          %v2077 = vpack.c.b16 %v2031, %v2029
          %v2078 = vpack.c.b16 %v2034, %v2032
          %v2079 = vpack.c.b16 %v2035, %v2033
          %v2080 = vpack.c.b16 %v2038, %v2036
          %v2081 = vpack.c.b16 %v2039, %v2037
          %v2082 = vpack.c.b16 %v2042, %v2040
          %v2083 = vpack.c.b16 %v2043, %v2041
          %v2084 = vpack.c.b16 %v2046, %v2044
          %v2085 = vpack.c.b16 %v2047, %v2045
          %v2086 = vpack.c.b16 %v2050, %v2048
          %v2087 = vpack.c.b16 %v2051, %v2049
          %v2088 = vpack.c.b16 %v2054, %v2052
          %v2089 = vpack.c.b16 %v2055, %v2053
          %v2090 = vpack.c.b16 %v2058, %v2056
          %v2091 = vpack.c.b16 %v2059, %v2057
          %2124 = vmatprep.subr.bf16.mxu0 %v2075
          %2125 = vmatpush1.bf16.msra.mxu0 %v2074
          %2126 = vmatprep.subr.bf16.mxu0 %v2073
          %2127 = vmatpush1.bf16.msra.mxu0 %v2072
          %2128 = vmatprep.subr.bf16.mxu0 %v2071
          %2129 = vmatpush1.bf16.msra.mxu0 %v2070
          %2130 = vmatprep.subr.bf16.mxu0 %v2069
          %2131 = vmatpush1.bf16.msra.mxu0 %v2068
          %2132 = vmatprep.subr.bf16.mxu0 %v2067
          %2133 = vmatpush1.bf16.msra.mxu0 %v2066
          %2134 = vmatprep.subr.bf16.mxu0 %v2065
          %2135 = vmatpush1.bf16.msra.mxu0 %v2064
          %2136 = vmatprep.subr.bf16.mxu0 %v2063
          %2137 = vmatpush1.bf16.msra.mxu0 %v2062
          %2138 = vmatprep.subr.bf16.mxu0 %v2061
          %2139 = vmatpush1.bf16.msra.mxu0 %v2060
          %2140 = vmatprep.subr.bf16.mxu0 %v2091
          %2141 = vmatpush2.bf16.msra.mxu0 %v2090
          %2142 = vmatprep.subr.bf16.mxu0 %v2089
          %2143 = vmatpush2.bf16.msra.mxu0 %v2088
          %2144 = vmatprep.subr.bf16.mxu0 %v2087
          %2145 = vmatpush2.bf16.msra.mxu0 %v2086
          %2146 = vmatprep.subr.bf16.mxu0 %v2085
          %2147 = vmatpush2.bf16.msra.mxu0 %v2084
          %2148 = vmatprep.subr.bf16.mxu0 %v2083
          %2149 = vmatpush2.bf16.msra.mxu0 %v2082
          %2150 = vmatprep.subr.bf16.mxu0 %v2081
          %2151 = vmatpush2.bf16.msra.mxu0 %v2080
          %2152 = vmatprep.subr.bf16.mxu0 %v2079
          %2153 = vmatpush2.bf16.msra.mxu0 %v2078
          %2154 = vmatprep.subr.bf16.mxu0 %v2077
          %2155 = vmatpush2.bf16.msra.mxu0 %v2076
          %2156 = vmatprep.mubr.bf16.mxu0 %v1692
          %2157 = vmatmul.mubr.bf16.gmra.mxu0 %v1691
          %v2158 = vpop.f32.mrf.mxu0
          %v2159 = vadd.f32 %v1958, %v2158
          %v2160 = vpop.f32.mrf.mxu0
          %v2161 = vadd.f32 %v1960, %v2160
          %v2162 = vpop.f32.mrf.mxu0
          %v2163 = vpop.f32.mrf.mxu0
          %2164 = vdwg.mxu0
          %v2165 = vld [vmem:[#allocation18] sm:$0x3]
          %v2167 = vlaneseq
          %v2168 = vshrl.u32 %v2167, 7
          %v2169 = vsub.s32 0, %v2168
          %v2170 = vrot.slane %v2165, %v2169
          %v2171 = vlaneseq
          %v2172 = vshrl.u32 %v2171, 7
          %v2173 = vsub.s32 1, %v2172
          %v2174 = vrot.slane %v2165, %v2173
          %v2177 = vadd.f32 %v2159, %v2170
          %v2178 = vadd.f32 %v2161, %v2174
          %2179 = vst [vmem:[#allocation19] sm:$0xff] %v2177
          %2180 = vst [vmem:[#allocation19 + $0x8] sm:$0xff] %v2178
        $region84: #{hfnet_glob_forward.1} parent=47 // pred_fallthru
          _
        // Predicated region
        $region85: #{hfnet_glob_forward.1} parent=47 // pred_check
          %p2181 = pneg %p204
        $region86: #{hfnet_glob_forward.1} parent=47 // pred_check_branch
          %2183 = sbr.rel (%p2181) target = $region88
        $region87: #{hfnet_glob_forward.1} parent=47 // pred_region
          %s2185 = ssub.s32 256, 256
          %2186 = vsyncadd [#allocation9], %s2185
          %s2188 = sshll.u32 [#allocation19], 4
          %s2189 = int_to_ptr.vmem [resolvable:$true] %s2188
          %2191 = dma.vmem_to_hbm [thread:$0]  %s2189, 256, %s7, [#allocation9]
        $region88: #{hfnet_glob_forward.1} parent=47 // pred_fallthru
          _
        // Predicated region
        $region89: #{hfnet_glob_forward.1} parent=47 // pred_check
          %p2192 = pneg %p225
        $region90: #{hfnet_glob_forward.1} parent=47 // pred_check_branch
          %2194 = sbr.rel (%p2192) target = $region92
        $region91: #{hfnet_glob_forward.1} parent=47 // pred_region
          _
        $region92: #{hfnet_glob_forward.1} parent=47 // pred_fallthru
          _
        // Predicated region
        $region93: #{hfnet_glob_forward.1} parent=47 // pred_check
          %p2195 = pneg %p204
        $region94: #{hfnet_glob_forward.1} parent=47 // pred_check_branch
          %2197 = sbr.rel (%p2195) target = $region96
        $region95: #{hfnet_glob_forward.1} parent=47 // pred_region
          %2198 = dma.done [#allocation9], 256
        $region96: #{hfnet_glob_forward.1} parent=47 // pred_fallthru
          _
        // Predicated region
        $region97: #{hfnet_glob_forward.1} parent=47 // pred_check
          %p2199 = pneg %p225
        $region98: #{hfnet_glob_forward.1} parent=47 // pred_check_branch
          %2201 = sbr.rel (%p2199) target = $region100
        $region99: #{hfnet_glob_forward.1} parent=47 // pred_region
          _
        $region100: #{hfnet_glob_forward.1} parent=47 // pred_fallthru
          _
      $region48: #{hfnet_glob_forward.1} parent=5 // pred_fallthru
        _
      %p2202 = scmp.le.s32.totalorder 2, %s24
      // Predicated region
      $region101: #{hfnet_glob_forward.1} parent=5 // pred_check
        %p2203 = pneg %p2202
      $region102: #{hfnet_glob_forward.1} parent=5 // pred_check_branch
        %2205 = sbr.rel (%p2203) target = $region104
      $region103: #{hfnet_glob_forward.1} parent=5 // pred_region
        %s2206 = ssub.s32 %s24, 2
      $region104: #{hfnet_glob_forward.1} parent=5 // pred_fallthru
        _
    $region6: #{hfnet_glob_forward.1} parent=1 // loop_footer
      %s28 = sadd.s32 1, %s24
    $region7: #{hfnet_glob_forward.1} parent=1 // loop_footer_branch
      %23 = sbr.rel target = $region3
    $region8: #{hfnet_glob_forward.1} parent=1 // loop_exit
      _
    %2207 = vsyncpa [#allocation8], 1
    %s2208 = scalar_lea.sflag [#allocation8], 1
    %2209 = vsyncpa %s2208, 1
    %2210 = vsyncpa [#allocation11], 1
    %s2211 = scalar_lea.sflag [#allocation11], 1
    %2212 = vsyncpa %s2211, 1
    %2213 = vsyncpa [#allocation14], 1
    %2214 = vsyncpa [#allocation17], 1
    %2215 = vsyncpa [#allocation9], 1
    %s2216 = scalar_lea.sflag [#allocation9], 1
    %2217 = vsyncpa %s2216, 1

</llo_original>
